<compile_context>
chip_gen: v5e
topology: v5e:2x2
jax: 0.10.0
libtpu: 0.0.40
codegen_flags: <defaults>
</compile_context>

<pallas_src>
import math

import numpy as np
import jax
import jax.numpy as jnp
from jax.experimental import pallas as pl
from jax.experimental.pallas import tpu as pltpu


# -----------------------------------------------------------------------------
# Fused Pallas kernel: down-conv -> inner-conv -> sub-pixel transposed conv.
# Each stage = 2-3 row-shifted banded bf16 matmuls + fused BN(shift) + ReLU.
# -----------------------------------------------------------------------------
def _fused_block_kernel(xs_ref, mk_ref, bd_ref, sd_ref, bi_ref, si_ref,
                        bu_ref, su_ref, o_ref, h_scr):
    # xs_ref : (1, T, Kd_p)   bf16  space-to-depth'd input rows, T = B_blk*(Ho+2)
    # mk_ref : (1, T-2, 1)    f32   1.0 on real rows, 0.0 on per-image pad rows
    # bd_ref : (2, Kd_p, Nh)  bf16  banded down-conv weight (BN scale folded in)
    # sd_ref : (1, Nh)        f32   down-conv BN shift
    # bi_ref : (3, Nh, Nh)    bf16  banded 3x3 conv weight
    # si_ref : (1, Nh)        f32
    # bu_ref : (3, Nh, No)    bf16  banded sub-pixel deconv weight
    # su_ref : (1, No)        f32
    # o_ref  : (1, T, No)     f32   phase-packed output rows (pad rows dropped on host)
    # h_scr  : (T, Nh)        f32   batch-stacked, row-padded hidden activation (VMEM)
    t_rows = h_scr.shape[0]
    m = t_rows - 2                       # matmul M: all B_blk images' rows at once

    def band_conv(src, w_ref, shift_ref):
        taps, _, ncol = w_ref.shape
        acc = jnp.zeros((m, ncol), jnp.float32)
        for t in range(taps):            # static unroll (2-3 taps), bf16 MXU feeds
            acc = acc + jnp.dot(src(t), w_ref[t],
                                preferred_element_type=jnp.float32)
        # f32 VPU epilogue: BN shift + ReLU (BN scale already folded into w_ref)
        return jnp.maximum(acc + shift_ref[...], 0.0)

    # zero only the two outer border rows; interior rows are overwritten every step
    zrow = jnp.zeros((1, h_scr.shape[1]), h_scr.dtype)
    h_scr[0:1, :] = zrow
    h_scr[t_rows - 1:t_rows, :] = zrow

    mask = mk_ref[0]                     # (m, 1): zeroes rows straddling image borders

    # stage 1: Conv(4x4, s=2, p=1) on the space-to-depth input (2 row taps, bf16 input)
    h1 = band_conv(lambda t: xs_ref[0, t:t + m, :], bd_ref, sd_ref)
    h_scr[1:1 + m, :] = h1 * mask

    # stages 2-3 read the f32 hidden scratch; cast to bf16 right before the MXU
    hload = lambda t: h_scr[t:t + m, :].astype(jnp.bfloat16)

    # stage 2: Conv(3x3, s=1, p=1) (3 row taps)
    h2 = band_conv(hload, bi_ref, si_ref)
    h_scr[1:1 + m, :] = h2 * mask

    # stage 3: ConvTranspose(4x4, s=2, p=1) with sub-pixel phases packed into lanes
    o_ref[0, 1:1 + m, :] = band_conv(hload, bu_ref, su_ref)
    ozero = jnp.zeros((1, o_ref.shape[2]), o_ref.dtype)
    o_ref[0, 0:1, :] = ozero
    o_ref[0, t_rows - 1:t_rows, :] = ozero


# -----------------------------------------------------------------------------
# One-time host-side weight preparation (hoisted out of the per-call jit):
# BN folding, banded / phase-packed layout, lane padding to 128, bf16 casts.
# -----------------------------------------------------------------------------
def _bn_scale_shift(bn, eps=1e-5):
    gamma, beta, mean, var = (np.asarray(p, np.float32) for p in bn)
    scale = gamma / np.sqrt(var + eps)
    return scale, beta - mean * scale


def _banded(w_taps, in_cols, out_cols, col_off=0):
    """w_taps: (T, KW, Cin, Cout) -> (T, in_cols*Cin, out_cols*Cout) with
       B[t, (v, ci), (w, co)] = w_taps[t, v - w + col_off, ci, co] (0 elsewhere)."""
    t_n, kw_n, cin, cout = w_taps.shape
    ind = np.zeros((in_cols, kw_n, out_cols), np.float32)
    for k in range(kw_n):
        for w in range(out_cols):
            v = w + k - col_off
            if 0 <= v < in_cols:
                ind[v, k, w] = 1.0
    b = np.einsum("pkw,tkic->tpiwc", ind, w_taps)
    return b.reshape(t_n, in_cols * cin, out_cols * cout)


def _down_taps(w_oihw, scale, cin, chid_p):
    """Conv2d(Cin->Chid, 4, s=2, p=1) after space-to-depth == 2x2 stride-1 conv.
    Returns (row-tap, col-tap, 4*Cin, Chid_p), BN scale folded, hidden ch padded."""
    chid = w_oihw.shape[0]
    w = np.transpose(w_oihw, (2, 3, 1, 0)) * scale            # (kh, kw, ci, co)*scale_co
    w = w.reshape(2, 2, 2, 2, cin, chid).transpose(0, 2, 1, 3, 4, 5)
    w = w.reshape(2, 2, 4 * cin, chid)
    return np.pad(w, ((0, 0), (0, 0), (0, 0), (0, chid_p - chid)))


def _inner_taps(w_oihw, scale, chid_p):
    chid = w_oihw.shape[0]
    w = np.transpose(w_oihw, (2, 3, 1, 0)) * scale            # (3, 3, ci, co)
    return np.pad(w, ((0, 0), (0, 0), (0, chid_p - chid), (0, chid_p - chid)))


def _subpixel_deconv_banded(w_iohw, scale, wo, chid_p):
    """ConvTranspose2d(k=4, s=2, p=1) -> banded sub-pixel weights.
    Returns (3, wo*Chid_p, 2*wo*2*Cout): per row-tap d, maps the lane-packed hidden
    row (w*Chid_p + ci) to the phase-packed output row (py, 2w+px, co)."""
    chid, cout = w_iohw.shape[0], w_iohw.shape[1]
    wt = np.transpose(w_iohw, (2, 3, 0, 1)) * scale           # (kh, kw, ci, co)*scale_co
    wt = np.pad(wt, ((0, 0), (0, 0), (0, chid_p - chid), (0, 0)))
    pk = np.array([[3, 1], [2, 0]])      # [phase][tap] -> transposed-conv kernel index
    off = np.array([0, 1])               # [phase] -> first (row-padded) offset
    wsel = wt[pk][:, :, pk]              # (py, a, px, b, ci, co)
    iy = np.zeros((3, 2, 2), np.float32)          # (d, py, a): d = off[py] + a
    ix = np.zeros((wo, 2, 2, wo), np.float32)     # (v', px, b, v): v' = v + off[px] + b - 1
    for p in range(2):
        for t in range(2):
            iy[off[p] + t, p, t] = 1.0
            for v in range(wo):
                vp = v + off[p] + t - 1
                if 0 <= vp < wo:
                    ix[vp, p, t, v] = 1.0
    b = np.einsum("dya,wxbv,yaxbic->dwiyvxc", iy, ix, wsel)
    return b.reshape(3, wo * chid_p, 2 * wo * 2 * cout)


def prepare_conv_deconv_params(params, height, width, eps=1e-5):
    """Call ONCE per (params, H, W); the result is reused by every forward call."""
    down_w = np.asarray(params["down_w"], np.float32)     # (Chid, Cin, 4, 4)
    inner_w = np.asarray(params["inner_w"], np.float32)   # (Chid, Chid, 3, 3)
    up_w = np.asarray(params["up_w"], np.float32)         # (Chid, Cin, 4, 4)
    chid, cin = down_w.shape[0], down_w.shape[1]
    wo = width // 2
    ws = wo + 1

    # pad hidden channels so the lane-packed hidden row (Wo*Chid_p) is a multiple of
    # 128 -> unmasked vld/vst and full MXU N columns (padded lanes stay exactly zero).
    step = 128 // math.gcd(wo, 128)
    chid_p = -(-chid // step) * step
    if chid_p > 2 * chid:                 # don't more-than-double just for lane padding
        chid_p = chid
    # pad the stage-1 K (input lane) width to a multiple of 128 as well
    kd = ws * 4 * cin
    kd_p = -(-kd // 128) * 128

    sc_d, sh_d = _bn_scale_shift(params["down_bn"], eps)
    sc_i, sh_i = _bn_scale_shift(params["inner_bn"], eps)
    sc_u, sh_u = _bn_scale_shift(params["up_bn"], eps)

    bd = _banded(_down_taps(down_w, sc_d, cin, chid_p), ws, wo, col_off=0)
    bd = np.pad(bd, ((0, 0), (0, kd_p - kd), (0, 0)))
    bi = _banded(_inner_taps(inner_w, sc_i, chid_p), wo, wo, col_off=1)
    bu = _subpixel_deconv_banded(up_w, sc_u, wo, chid_p)

    pad_c = chid_p - chid
    return {
        "bd": jnp.asarray(bd).astype(jnp.bfloat16),
        "bi": jnp.asarray(bi).astype(jnp.bfloat16),
        "bu": jnp.asarray(bu).astype(jnp.bfloat16),
        "sd": jnp.asarray(np.tile(np.pad(sh_d, (0, pad_c)), wo)[None, :], jnp.float32),
        "si": jnp.asarray(np.tile(np.pad(sh_i, (0, pad_c)), wo)[None, :], jnp.float32),
        "su": jnp.asarray(np.tile(sh_u, 2 * wo * 2)[None, :], jnp.float32),
    }


# -----------------------------------------------------------------------------
# Forward pass
# -----------------------------------------------------------------------------
@jax.jit
def conv_deconv_block_forward(x_nchw, prep):
    # pre = identity, post = identity, with_skip = False (module defaults)
    x = jnp.transpose(x_nchw, (0, 2, 3, 1)).astype(jnp.float32)      # NCHW -> NHWC
    n, h, w, cin = x.shape
    ho, wo = h // 2, w // 2
    hs, ws = ho + 1, wo + 1
    seg = ho + 2                                   # rows per image incl. 2 pad rows

    kd = ws * 4 * cin
    kd_p = prep["bd"].shape[1]                     # padded stage-1 K (multiple of 128)
    nh = prep["bd"].shape[2]                       # Wo * Chid_p
    no = prep["bu"].shape[2]                       # 2 * Wo * 2 * Cin

    # batch folding into the MXU M dimension: B_blk images per grid step
    # (M = B_blk*(Ho+2)-2 rows per matmul), while keeping >= 2 "parallel" grid
    # steps so both v7x TensorCores get work; M capped near the 256-row MXU.
    max_b = min(n // 2, max(1, 256 // seg)) if n >= 2 else 1
    b_blk = next(c for c in range(max(1, max_b), 0, -1) if n % c == 0)
    grid_n = n // b_blk
    t_rows = b_blk * seg

    # space-to-depth of the zero-padded input (4x4/s2 conv -> 2x2/s1 conv); rows are
    # lane-packed as (Ws*4*Cin), zero-padded to a multiple of 128 lanes, one trailing
    # zero row per image (batch-stacking pad), and pre-cast to bf16 (half the DMA).
    xp = jnp.pad(x, ((0, 0), (1, 1), (1, 1), (0, 0)))
    xs = xp.reshape(n, hs, 2, ws, 2, cin).transpose(0, 1, 3, 2, 4, 5)
    xs = xs.reshape(n, hs, kd)
    xs = jnp.pad(xs, ((0, 0), (0, seg - hs), (0, kd_p - kd)))
    xs = xs.reshape(grid_n, t_rows, kd_p).astype(jnp.bfloat16)

    # 1.0 on real rows, 0.0 on the per-image pad rows of the batch-stacked layout
    q = (jnp.arange(t_rows - 2) + 1) % seg
    mask = ((q != 0) & (q != seg - 1)).astype(jnp.float32).reshape(1, t_rows - 2, 1)

    y = pl.pallas_call(
        _fused_block_kernel,
        out_shape=jax.ShapeDtypeStruct((grid_n, t_rows, no), jnp.float32),
        grid=(grid_n,),
        in_specs=[
            pl.BlockSpec((1, t_rows, kd_p), lambda i: (i, 0, 0)),
            # constant-index inputs: single-buffer them (halves their VMEM footprint,
            # which matters most under v7x's 64 MiB physical VMEM).
            pl.BlockSpec((1, t_rows - 2, 1), lambda i: (0, 0, 0),
                         pipeline_mode=pl.Buffered(1)),
            pl.BlockSpec(prep["bd"].shape, lambda i: (0, 0, 0),
                         pipeline_mode=pl.Buffered(1)),
            pl.BlockSpec(prep["sd"].shape, lambda i: (0, 0),
                         pipeline_mode=pl.Buffered(1)),
            pl.BlockSpec(prep["bi"].shape, lambda i: (0, 0, 0),
                         pipeline_mode=pl.Buffered(1)),
            pl.BlockSpec(prep["si"].shape, lambda i: (0, 0),
                         pipeline_mode=pl.Buffered(1)),
            pl.BlockSpec(prep["bu"].shape, lambda i: (0, 0, 0),
                         pipeline_mode=pl.Buffered(1)),
            pl.BlockSpec(prep["su"].shape, lambda i: (0, 0),
                         pipeline_mode=pl.Buffered(1)),
        ],
        out_specs=pl.BlockSpec((1, t_rows, no), lambda i: (i, 0, 0)),
        scratch_shapes=[pltpu.VMEM((t_rows, nh), jnp.float32)],
        compiler_params=pltpu.CompilerParams(
            dimension_semantics=("parallel",),
            vmem_limit_bytes=48 * 1024 * 1024,     # <= v7x's 64 MiB physical VMEM
        ),
    )(xs, mask, prep["bd"], prep["sd"], prep["bi"], prep["si"],
      prep["bu"], prep["su"])

    # drop the per-image pad rows, then de-interleave the 4 sub-pixel phases:
    # (N, Ho, [py | 2Wo | Cin]) -> (N, 2Ho, 2Wo, Cin)
    y = y.reshape(n, seg, no)[:, 1:1 + ho, :]
    y = y.reshape(n, ho, 2, 2 * wo, cin).reshape(n, 2 * ho, 2 * wo, cin)
    return jnp.transpose(y, (0, 3, 1, 2))                            # NHWC -> NCHW


# -----------------------------------------------------------------------------
# Parameters + plain-XLA reference (for a numerical self-check)
# -----------------------------------------------------------------------------
def init_conv_deconv_block(key, in_channels, hidden_channels):
    k1, k2, k3 = jax.random.split(key, 3)

    def bn_params(c):  # PyTorch BatchNorm2d defaults (eval mode): gamma, beta, mean, var
        return (jnp.ones((c,), jnp.float32), jnp.zeros((c,), jnp.float32),
                jnp.zeros((c,), jnp.float32), jnp.ones((c,), jnp.float32))

    def kaiming(key, shape, fan_in):
        return jax.random.normal(key, shape, jnp.float32) * jnp.sqrt(2.0 / fan_in)

    return {
        # Conv2d(Cin, Chid, 4, stride=2, padding=1, bias=False)
        "down_w": kaiming(k1, (hidden_channels, in_channels, 4, 4), in_channels * 16),
        "down_bn": bn_params(hidden_channels),
        # ConvBlock(Chid, Chid, 3, stride=1, padding=1, bias=False)
        "inner_w": kaiming(k2, (hidden_channels, hidden_channels, 3, 3), hidden_channels * 9),
        "inner_bn": bn_params(hidden_channels),
        # ConvTranspose2d(Chid, Cin, 4, stride=2, padding=1, bias=False)
        "up_w": kaiming(k3, (hidden_channels, in_channels, 4, 4), hidden_channels * 16),
        "up_bn": bn_params(in_channels),
    }


@jax.jit
def _reference_forward(x_nchw, params, eps=1e-5):
    x = jnp.transpose(x_nchw, (0, 2, 3, 1)).astype(jnp.float32)

    def bn_relu(y, bn):
        g, b, m, v = bn
        return jnp.maximum((y - m) * (g / jnp.sqrt(v + eps)) + b, 0.0)

    y = jax.lax.conv_general_dilated(
        x, jnp.transpose(params["down_w"], (2, 3, 1, 0)), (2, 2), ((1, 1), (1, 1)),
        dimension_numbers=("NHWC", "HWIO", "NHWC"))
    y = bn_relu(y, params["down_bn"])
    y = jax.lax.conv_general_dilated(
        y, jnp.transpose(params["inner_w"], (2, 3, 1, 0)), (1, 1), ((1, 1), (1, 1)),
        dimension_numbers=("NHWC", "HWIO", "NHWC"))
    y = bn_relu(y, params["inner_bn"])
    w_up = jnp.transpose(params["up_w"][:, :, ::-1, ::-1], (2, 3, 0, 1))
    y = jax.lax.conv_general_dilated(
        y, w_up, (1, 1), ((2, 2), (2, 2)), lhs_dilation=(2, 2),
        dimension_numbers=("NHWC", "HWIO", "NHWC"))
    y = bn_relu(y, params["up_bn"])
    return jnp.transpose(y, (0, 3, 1, 2))


if __name__ == "__main__":
    key = jax.random.PRNGKey(0)
    kx, kp = jax.random.split(key)

    N, Cin, H, W = 4, 4, 16, 16       # N=4 exercises batch-folding (2 images / grid step)
    hidden = 8

    x = jax.random.normal(kx, (N, Cin, H, W), jnp.float32)
    params = init_conv_deconv_block(kp, Cin, hidden)

    prep = prepare_conv_deconv_params(params, H, W)   # one-time weight prep (hoisted)

    out = jax.block_until_ready(conv_deconv_block_forward(x, prep))

    assert out.shape == (N, Cin, H, W), out.shape
    assert out.dtype == jnp.float32
    assert bool(jnp.all(jnp.isfinite(out)))

    # numerical self-check against a plain-XLA reference (bf16-MXU tolerance)
    ref = jax.block_until_ready(_reference_forward(x, params))
    assert bool(jnp.allclose(out, ref, atol=1e-1, rtol=1e-1)), \
        float(jnp.max(jnp.abs(out - ref)))

    print("KERNEL_OK")
</pallas_src>

<mosaic_0001>
module attributes {stable_mosaic.version = 11 : i64} {
  func.func @_fused_block_kernel(%arg0: i32, %arg1: memref<1x20x256xbf16, #tpu.memory_space<vmem>>, %arg2: memref<1x18x1xf32, #tpu.memory_space<vmem>>, %arg3: memref<2x256x128xbf16, #tpu.memory_space<vmem>>, %arg4: memref<1x128xf32, #tpu.memory_space<vmem>>, %arg5: memref<3x128x128xbf16, #tpu.memory_space<vmem>>, %arg6: memref<1x128xf32, #tpu.memory_space<vmem>>, %arg7: memref<3x128x128xbf16, #tpu.memory_space<vmem>>, %arg8: memref<1x128xf32, #tpu.memory_space<vmem>>, %arg9: memref<1x20x128xf32, #tpu.memory_space<vmem>>, %arg10: memref<20x128xf32, #tpu.memory_space<vmem>>) attributes {dimension_semantics = [#tpu.dimension_semantics<parallel>], iteration_bounds = array<i64: 2>, scalar_prefetch = 0 : i64, scratch_operands = 1 : i64, tpu.core_type = #tpu.core_type<tc>, window_params = [{transform_indices = @transform_0, window_bounds = array<i64: 1, 20, 256>}, {pipeline_mode = #tpu.pipeline_mode<synchronous>, transform_indices = @transform_1, window_bounds = array<i64: 1, 18, 1>}, {pipeline_mode = #tpu.pipeline_mode<synchronous>, transform_indices = @transform_2, window_bounds = array<i64: 2, 256, 128>}, {pipeline_mode = #tpu.pipeline_mode<synchronous>, transform_indices = @transform_3, window_bounds = array<i64: 1, 128>}, {pipeline_mode = #tpu.pipeline_mode<synchronous>, transform_indices = @transform_4, window_bounds = array<i64: 3, 128, 128>}, {pipeline_mode = #tpu.pipeline_mode<synchronous>, transform_indices = @transform_5, window_bounds = array<i64: 1, 128>}, {pipeline_mode = #tpu.pipeline_mode<synchronous>, transform_indices = @transform_6, window_bounds = array<i64: 3, 128, 128>}, {pipeline_mode = #tpu.pipeline_mode<synchronous>, transform_indices = @transform_7, window_bounds = array<i64: 1, 128>}, {transform_indices = @transform_8, window_bounds = array<i64: 1, 20, 128>}]} {
    %cst = arith.constant 0.000000e+00 : f32
    %0 = vector.broadcast %cst : f32 to vector<1x128xf32>
    %c0 = arith.constant 0 : index
    %c0_0 = arith.constant 0 : index
    %1 = vector.load %arg10[%c0, %c0_0] : memref<20x128xf32, #tpu.memory_space<vmem>>, vector<1x128xf32>
    tpu.vector_store %arg10[%c0, %c0_0], %0 {strides = array<i32>} : memref<20x128xf32, #tpu.memory_space<vmem>>, vector<1x128xf32>,
    %c19 = arith.constant 19 : index
    %c0_1 = arith.constant 0 : index
    %2 = vector.load %arg10[%c19, %c0_1] : memref<20x128xf32, #tpu.memory_space<vmem>>, vector<1x128xf32>
    tpu.vector_store %arg10[%c19, %c0_1], %0 {strides = array<i32>} : memref<20x128xf32, #tpu.memory_space<vmem>>, vector<1x128xf32>,
    %c0_2 = arith.constant 0 : index
    %c0_3 = arith.constant 0 : index
    %c0_4 = arith.constant 0 : index
    %3 = vector.load %arg2[%c0_2, %c0_3, %c0_4] : memref<1x18x1xf32, #tpu.memory_space<vmem>>, vector<1x18x1xf32>
    %4 = vector.shape_cast %3 : vector<1x18x1xf32> to vector<18x1xf32>
    %cst_5 = arith.constant 0.000000e+00 : f32
    %5 = vector.broadcast %cst_5 : f32 to vector<18x128xf32>
    %c0_6 = arith.constant 0 : index
    %c0_7 = arith.constant 0 : index
    %c0_8 = arith.constant 0 : index
    %6 = vector.load %arg1[%c0_6, %c0_7, %c0_8] : memref<1x20x256xbf16, #tpu.memory_space<vmem>>, vector<1x18x256xbf16>
    %7 = vector.shape_cast %6 : vector<1x18x256xbf16> to vector<18x256xbf16>
    %c0_9 = arith.constant 0 : index
    %c0_10 = arith.constant 0 : index
    %c0_11 = arith.constant 0 : index
    %8 = vector.load %arg3[%c0_9, %c0_10, %c0_11] : memref<2x256x128xbf16, #tpu.memory_space<vmem>>, vector<1x256x128xbf16>
    %9 = vector.shape_cast %8 : vector<1x256x128xbf16> to vector<256x128xbf16>
    %cst_12 = arith.constant dense<0.000000e+00> : vector<18x128xf32>
    %10 = tpu.matmul %7, %9, %cst_12 {dimension_numbers = #tpu.dot_dimension_numbers<[1], [0], [0], [1], [0, 0, 1, 1], [], []>} : vector<18x256xbf16>, vector<256x128xbf16>, vector<18x128xf32> -> vector<18x128xf32>
    %11 = arith.addf %5, %10 : vector<18x128xf32>
    %c0_13 = arith.constant 0 : index
    %c1 = arith.constant 1 : index
    %c0_14 = arith.constant 0 : index
    %12 = vector.load %arg1[%c0_13, %c1, %c0_14] : memref<1x20x256xbf16, #tpu.memory_space<vmem>>, vector<1x18x256xbf16>
    %13 = vector.shape_cast %12 : vector<1x18x256xbf16> to vector<18x256xbf16>
    %c1_15 = arith.constant 1 : index
    %c0_16 = arith.constant 0 : index
    %c0_17 = arith.constant 0 : index
    %14 = vector.load %arg3[%c1_15, %c0_16, %c0_17] : memref<2x256x128xbf16, #tpu.memory_space<vmem>>, vector<1x256x128xbf16>
    %15 = vector.shape_cast %14 : vector<1x256x128xbf16> to vector<256x128xbf16>
    %cst_18 = arith.constant dense<0.000000e+00> : vector<18x128xf32>
    %16 = tpu.matmul %13, %15, %cst_18 {dimension_numbers = #tpu.dot_dimension_numbers<[1], [0], [0], [1], [0, 0, 1, 1], [], []>} : vector<18x256xbf16>, vector<256x128xbf16>, vector<18x128xf32> -> vector<18x128xf32>
    %17 = arith.addf %11, %16 : vector<18x128xf32>
    %c0_19 = arith.constant 0 : index
    %c0_20 = arith.constant 0 : index
    %18 = vector.load %arg4[%c0_19, %c0_20] : memref<1x128xf32, #tpu.memory_space<vmem>>, vector<1x128xf32>
    %19 = vector.broadcast %18 : vector<1x128xf32> to vector<18x128xf32>
    %20 = arith.addf %17, %19 : vector<18x128xf32>
    %cst_21 = arith.constant 0.000000e+00 : f32
    %21 = vector.broadcast %cst_21 : f32 to vector<18x128xf32>
    %22 = arith.maximumf %20, %21 : vector<18x128xf32>
    %23 = vector.broadcast %4 : vector<18x1xf32> to vector<18x128xf32>
    %24 = arith.mulf %22, %23 : vector<18x128xf32>
    %c1_22 = arith.constant 1 : index
    %c0_23 = arith.constant 0 : index
    %25 = vector.load %arg10[%c1_22, %c0_23] : memref<20x128xf32, #tpu.memory_space<vmem>>, vector<18x128xf32>
    tpu.vector_store %arg10[%c1_22, %c0_23], %24 {strides = array<i32>} : memref<20x128xf32, #tpu.memory_space<vmem>>, vector<18x128xf32>,
    %cst_24 = arith.constant 0.000000e+00 : f32
    %26 = vector.broadcast %cst_24 : f32 to vector<18x128xf32>
    %c0_25 = arith.constant 0 : index
    %c0_26 = arith.constant 0 : index
    %27 = vector.load %arg10[%c0_25, %c0_26] : memref<20x128xf32, #tpu.memory_space<vmem>>, vector<18x128xf32>
    %28 = arith.truncf %27 : vector<18x128xf32> to vector<18x128xbf16>
    %c0_27 = arith.constant 0 : index
    %c0_28 = arith.constant 0 : index
    %c0_29 = arith.constant 0 : index
    %29 = vector.load %arg5[%c0_27, %c0_28, %c0_29] : memref<3x128x128xbf16, #tpu.memory_space<vmem>>, vector<1x128x128xbf16>
    %30 = vector.shape_cast %29 : vector<1x128x128xbf16> to vector<128x128xbf16>
    %cst_30 = arith.constant dense<0.000000e+00> : vector<18x128xf32>
    %31 = tpu.matmul %28, %30, %cst_30 {dimension_numbers = #tpu.dot_dimension_numbers<[1], [0], [0], [1], [0, 0, 1, 1], [], []>} : vector<18x128xbf16>, vector<128x128xbf16>, vector<18x128xf32> -> vector<18x128xf32>
    %32 = arith.addf %26, %31 : vector<18x128xf32>
    %c1_31 = arith.constant 1 : index
    %c0_32 = arith.constant 0 : index
    %33 = vector.load %arg10[%c1_31, %c0_32] : memref<20x128xf32, #tpu.memory_space<vmem>>, vector<18x128xf32>
    %34 = arith.truncf %33 : vector<18x128xf32> to vector<18x128xbf16>
    %c1_33 = arith.constant 1 : index
    %c0_34 = arith.constant 0 : index
    %c0_35 = arith.constant 0 : index
    %35 = vector.load %arg5[%c1_33, %c0_34, %c0_35] : memref<3x128x128xbf16, #tpu.memory_space<vmem>>, vector<1x128x128xbf16>
    %36 = vector.shape_cast %35 : vector<1x128x128xbf16> to vector<128x128xbf16>
    %cst_36 = arith.constant dense<0.000000e+00> : vector<18x128xf32>
    %37 = tpu.matmul %34, %36, %cst_36 {dimension_numbers = #tpu.dot_dimension_numbers<[1], [0], [0], [1], [0, 0, 1, 1], [], []>} : vector<18x128xbf16>, vector<128x128xbf16>, vector<18x128xf32> -> vector<18x128xf32>
    %38 = arith.addf %32, %37 : vector<18x128xf32>
    %c2 = arith.constant 2 : index
    %c0_37 = arith.constant 0 : index
    %39 = vector.load %arg10[%c2, %c0_37] : memref<20x128xf32, #tpu.memory_space<vmem>>, vector<18x128xf32>
    %40 = arith.truncf %39 : vector<18x128xf32> to vector<18x128xbf16>
    %c2_38 = arith.constant 2 : index
    %c0_39 = arith.constant 0 : index
    %c0_40 = arith.constant 0 : index
    %41 = vector.load %arg5[%c2_38, %c0_39, %c0_40] : memref<3x128x128xbf16, #tpu.memory_space<vmem>>, vector<1x128x128xbf16>
    %42 = vector.shape_cast %41 : vector<1x128x128xbf16> to vector<128x128xbf16>
    %cst_41 = arith.constant dense<0.000000e+00> : vector<18x128xf32>
    %43 = tpu.matmul %40, %42, %cst_41 {dimension_numbers = #tpu.dot_dimension_numbers<[1], [0], [0], [1], [0, 0, 1, 1], [], []>} : vector<18x128xbf16>, vector<128x128xbf16>, vector<18x128xf32> -> vector<18x128xf32>
    %44 = arith.addf %38, %43 : vector<18x128xf32>
    %c0_42 = arith.constant 0 : index
    %c0_43 = arith.constant 0 : index
    %45 = vector.load %arg6[%c0_42, %c0_43] : memref<1x128xf32, #tpu.memory_space<vmem>>, vector<1x128xf32>
    %46 = vector.broadcast %45 : vector<1x128xf32> to vector<18x128xf32>
    %47 = arith.addf %44, %46 : vector<18x128xf32>
    %cst_44 = arith.constant 0.000000e+00 : f32
    %48 = vector.broadcast %cst_44 : f32 to vector<18x128xf32>
    %49 = arith.maximumf %47, %48 : vector<18x128xf32>
    %50 = vector.broadcast %4 : vector<18x1xf32> to vector<18x128xf32>
    %51 = arith.mulf %49, %50 : vector<18x128xf32>
    %c1_45 = arith.constant 1 : index
    %c0_46 = arith.constant 0 : index
    %52 = vector.load %arg10[%c1_45, %c0_46] : memref<20x128xf32, #tpu.memory_space<vmem>>, vector<18x128xf32>
    tpu.vector_store %arg10[%c1_45, %c0_46], %51 {strides = array<i32>} : memref<20x128xf32, #tpu.memory_space<vmem>>, vector<18x128xf32>,
    %cst_47 = arith.constant 0.000000e+00 : f32
    %53 = vector.broadcast %cst_47 : f32 to vector<18x128xf32>
    %c0_48 = arith.constant 0 : index
    %c0_49 = arith.constant 0 : index
    %54 = vector.load %arg10[%c0_48, %c0_49] : memref<20x128xf32, #tpu.memory_space<vmem>>, vector<18x128xf32>
    %55 = arith.truncf %54 : vector<18x128xf32> to vector<18x128xbf16>
    %c0_50 = arith.constant 0 : index
    %c0_51 = arith.constant 0 : index
    %c0_52 = arith.constant 0 : index
    %56 = vector.load %arg7[%c0_50, %c0_51, %c0_52] : memref<3x128x128xbf16, #tpu.memory_space<vmem>>, vector<1x128x128xbf16>
    %57 = vector.shape_cast %56 : vector<1x128x128xbf16> to vector<128x128xbf16>
    %cst_53 = arith.constant dense<0.000000e+00> : vector<18x128xf32>
    %58 = tpu.matmul %55, %57, %cst_53 {dimension_numbers = #tpu.dot_dimension_numbers<[1], [0], [0], [1], [0, 0, 1, 1], [], []>} : vector<18x128xbf16>, vector<128x128xbf16>, vector<18x128xf32> -> vector<18x128xf32>
    %59 = arith.addf %53, %58 : vector<18x128xf32>
    %c1_54 = arith.constant 1 : index
    %c0_55 = arith.constant 0 : index
    %60 = vector.load %arg10[%c1_54, %c0_55] : memref<20x128xf32, #tpu.memory_space<vmem>>, vector<18x128xf32>
    %61 = arith.truncf %60 : vector<18x128xf32> to vector<18x128xbf16>
    %c1_56 = arith.constant 1 : index
    %c0_57 = arith.constant 0 : index
    %c0_58 = arith.constant 0 : index
    %62 = vector.load %arg7[%c1_56, %c0_57, %c0_58] : memref<3x128x128xbf16, #tpu.memory_space<vmem>>, vector<1x128x128xbf16>
    %63 = vector.shape_cast %62 : vector<1x128x128xbf16> to vector<128x128xbf16>
    %cst_59 = arith.constant dense<0.000000e+00> : vector<18x128xf32>
    %64 = tpu.matmul %61, %63, %cst_59 {dimension_numbers = #tpu.dot_dimension_numbers<[1], [0], [0], [1], [0, 0, 1, 1], [], []>} : vector<18x128xbf16>, vector<128x128xbf16>, vector<18x128xf32> -> vector<18x128xf32>
    %65 = arith.addf %59, %64 : vector<18x128xf32>
    %c2_60 = arith.constant 2 : index
    %c0_61 = arith.constant 0 : index
    %66 = vector.load %arg10[%c2_60, %c0_61] : memref<20x128xf32, #tpu.memory_space<vmem>>, vector<18x128xf32>
    %67 = arith.truncf %66 : vector<18x128xf32> to vector<18x128xbf16>
    %c2_62 = arith.constant 2 : index
    %c0_63 = arith.constant 0 : index
    %c0_64 = arith.constant 0 : index
    %68 = vector.load %arg7[%c2_62, %c0_63, %c0_64] : memref<3x128x128xbf16, #tpu.memory_space<vmem>>, vector<1x128x128xbf16>
    %69 = vector.shape_cast %68 : vector<1x128x128xbf16> to vector<128x128xbf16>
    %cst_65 = arith.constant dense<0.000000e+00> : vector<18x128xf32>
    %70 = tpu.matmul %67, %69, %cst_65 {dimension_numbers = #tpu.dot_dimension_numbers<[1], [0], [0], [1], [0, 0, 1, 1], [], []>} : vector<18x128xbf16>, vector<128x128xbf16>, vector<18x128xf32> -> vector<18x128xf32>
    %71 = arith.addf %65, %70 : vector<18x128xf32>
    %c0_66 = arith.constant 0 : index
    %c0_67 = arith.constant 0 : index
    %72 = vector.load %arg8[%c0_66, %c0_67] : memref<1x128xf32, #tpu.memory_space<vmem>>, vector<1x128xf32>
    %73 = vector.broadcast %72 : vector<1x128xf32> to vector<18x128xf32>
    %74 = arith.addf %71, %73 : vector<18x128xf32>
    %cst_68 = arith.constant 0.000000e+00 : f32
    %75 = vector.broadcast %cst_68 : f32 to vector<18x128xf32>
    %76 = arith.maximumf %74, %75 : vector<18x128xf32>
    %c0_69 = arith.constant 0 : index
    %c1_70 = arith.constant 1 : index
    %c0_71 = arith.constant 0 : index
    %77 = vector.load %arg9[%c0_69, %c1_70, %c0_71] : memref<1x20x128xf32, #tpu.memory_space<vmem>>, vector<1x18x128xf32>
    %78 = vector.shape_cast %77 : vector<1x18x128xf32> to vector<18x128xf32>
    %79 = vector.shape_cast %76 : vector<18x128xf32> to vector<1x18x128xf32>
    tpu.vector_store %arg9[%c0_69, %c1_70, %c0_71], %79 {strides = array<i32>} : memref<1x20x128xf32, #tpu.memory_space<vmem>>, vector<1x18x128xf32>,
    %cst_72 = arith.constant 0.000000e+00 : f32
    %80 = vector.broadcast %cst_72 : f32 to vector<1x128xf32>
    %c0_73 = arith.constant 0 : index
    %c0_74 = arith.constant 0 : index
    %c0_75 = arith.constant 0 : index
    %81 = vector.load %arg9[%c0_73, %c0_74, %c0_75] : memref<1x20x128xf32, #tpu.memory_space<vmem>>, vector<1x1x128xf32>
    %82 = vector.shape_cast %81 : vector<1x1x128xf32> to vector<1x128xf32>
    %83 = vector.shape_cast %80 : vector<1x128xf32> to vector<1x1x128xf32>
    tpu.vector_store %arg9[%c0_73, %c0_74, %c0_75], %83 {strides = array<i32>} : memref<1x20x128xf32, #tpu.memory_space<vmem>>, vector<1x1x128xf32>,
    %c0_76 = arith.constant 0 : index
    %c19_77 = arith.constant 19 : index
    %c0_78 = arith.constant 0 : index
    %84 = vector.load %arg9[%c0_76, %c19_77, %c0_78] : memref<1x20x128xf32, #tpu.memory_space<vmem>>, vector<1x1x128xf32>
    %85 = vector.shape_cast %84 : vector<1x1x128xf32> to vector<1x128xf32>
    %86 = vector.shape_cast %80 : vector<1x128xf32> to vector<1x1x128xf32>
    tpu.vector_store %arg9[%c0_76, %c19_77, %c0_78], %86 {strides = array<i32>} : memref<1x20x128xf32, #tpu.memory_space<vmem>>, vector<1x1x128xf32>,
    return
  }
  func.func @transform_0(%arg0: i32) -> (i32, i32, i32) {
    %c0_i32 = arith.constant 0 : i32
    %c0_i32_0 = arith.constant 0 : i32
    %c0_i32_1 = arith.constant 0 : i32
    return %arg0, %c0_i32, %c0_i32_0 : i32, i32, i32
  }
  func.func @transform_1(%arg0: i32) -> (i32, i32, i32) {
    %c0_i32 = arith.constant 0 : i32
    %c0_i32_0 = arith.constant 0 : i32
    %c0_i32_1 = arith.constant 0 : i32
    %c0_i32_2 = arith.constant 0 : i32
    return %c0_i32, %c0_i32_0, %c0_i32_1 : i32, i32, i32
  }
  func.func @transform_2(%arg0: i32) -> (i32, i32, i32) {
    %c0_i32 = arith.constant 0 : i32
    %c0_i32_0 = arith.constant 0 : i32
    %c0_i32_1 = arith.constant 0 : i32
    %c0_i32_2 = arith.constant 0 : i32
    return %c0_i32, %c0_i32_0, %c0_i32_1 : i32, i32, i32
  }
  func.func @transform_3(%arg0: i32) -> (i32, i32) {
    %c0_i32 = arith.constant 0 : i32
    %c0_i32_0 = arith.constant 0 : i32
    %c0_i32_1 = arith.constant 0 : i32
    return %c0_i32, %c0_i32_0 : i32, i32
  }
  func.func @transform_4(%arg0: i32) -> (i32, i32, i32) {
    %c0_i32 = arith.constant 0 : i32
    %c0_i32_0 = arith.constant 0 : i32
    %c0_i32_1 = arith.constant 0 : i32
    %c0_i32_2 = arith.constant 0 : i32
    return %c0_i32, %c0_i32_0, %c0_i32_1 : i32, i32, i32
  }
  func.func @transform_5(%arg0: i32) -> (i32, i32) {
    %c0_i32 = arith.constant 0 : i32
    %c0_i32_0 = arith.constant 0 : i32
    %c0_i32_1 = arith.constant 0 : i32
    return %c0_i32, %c0_i32_0 : i32, i32
  }
  func.func @transform_6(%arg0: i32) -> (i32, i32, i32) {
    %c0_i32 = arith.constant 0 : i32
    %c0_i32_0 = arith.constant 0 : i32
    %c0_i32_1 = arith.constant 0 : i32
    %c0_i32_2 = arith.constant 0 : i32
    return %c0_i32, %c0_i32_0, %c0_i32_1 : i32, i32, i32
  }
  func.func @transform_7(%arg0: i32) -> (i32, i32) {
    %c0_i32 = arith.constant 0 : i32
    %c0_i32_0 = arith.constant 0 : i32
    %c0_i32_1 = arith.constant 0 : i32
    return %c0_i32, %c0_i32_0 : i32, i32
  }
  func.func @transform_8(%arg0: i32) -> (i32, i32, i32) {
    %c0_i32 = arith.constant 0 : i32
    %c0_i32_0 = arith.constant 0 : i32
    %c0_i32_1 = arith.constant 0 : i32
    return %arg0, %c0_i32, %c0_i32_0 : i32, i32, i32
  }
}

</mosaic_0001>

<llo_original>
// kernel: conv_deconv_block_forward.1
$region0: #{conv_deconv_block_forward.1}
  #allocation0 [shape = 'u32[]', space=smem, size = 0x4, offset = 0x4, fixed_abs, tag = 'smem constant byte address 0x4 - core index']
  #allocation1 [shape = 'u32[72,128]{1,0:T(1,128)}', space=vmem, size = 0x9000, scoped, tag = 'internal scratch']
  #allocation2 [shape = 'f32[20,128]{1,0:T(8,128)}', space=vmem, size = 0x3000, scoped, tag = 'scratch operand']
  %s0 = inlined_call_operand.vmem [shape: bf16[2,20,256], index: 0, kind: input, shape index: {}]
  %s1 = inlined_call_operand.vmem [shape: f32[1,18,1], index: 1, kind: input, shape index: {}]
  %s2 = inlined_call_operand.vmem [shape: bf16[2,256,128], index: 2, kind: input, shape index: {}]
  %s3 = inlined_call_operand.vmem [shape: f32[1,128], index: 3, kind: input, shape index: {}]
  %s4 = inlined_call_operand.vmem [shape: bf16[3,128,128], index: 4, kind: input, shape index: {}]
  %s5 = inlined_call_operand.vmem [shape: f32[1,128], index: 5, kind: input, shape index: {}]
  %s6 = inlined_call_operand.vmem [shape: bf16[3,128,128], index: 6, kind: input, shape index: {}]
  %s7 = inlined_call_operand.vmem [shape: f32[1,128], index: 7, kind: input, shape index: {}]
  %s8 = inlined_call_operand.vmem [shape: f32[2,20,128], index: 8, kind: output, shape index: {}]
  %s9 = sld [smem:[#allocation0]]
  $region65: #{conv_deconv_block_forward.1} parent=0
    _
  %s11 = ssub.s32 1, %s9
  %s12 = scalar_select 0, %s11, %s9
  loop: start=0, step=1, limit=4
  $region2: #{conv_deconv_block_forward.1} parent=0 // loop_pre_header
    _
  $region3: #{conv_deconv_block_forward.1} parent=0 // loop_header
    %s14 = sphi 0, %s18
    %p15 = scmp.ge.s32.totalorder %s14, 4
    %s24 = sphi 0, %s26
    %s27 = sphi 0, %s24
    %s28 = sphi 0, %s27
    %s44 = sphi 0, %s28
    %s48 = sphi 0, %s48
    %s50 = sphi 0, %s48
    %s51 = sphi 0, %s50
    %s65 = sphi 0, %s51
    %s69 = sphi 0, %s69
    %s71 = sphi 0, %s69
    %s72 = sphi 0, %s71
    %s86 = sphi 0, %s72
    %s90 = sphi 0, %s90
    %s92 = sphi 0, %s90
    %s93 = sphi 0, %s92
    %s107 = sphi 0, %s93
    %s111 = sphi 0, %s111
    %s113 = sphi 0, %s111
    %s114 = sphi 0, %s113
    %s128 = sphi 0, %s114
    %s132 = sphi 0, %s132
    %s134 = sphi 0, %s132
    %s135 = sphi 0, %s134
    %s149 = sphi 0, %s135
    %s153 = sphi 0, %s153
    %s155 = sphi 0, %s153
    %s156 = sphi 0, %s155
    %s170 = sphi 0, %s156
    %s174 = sphi 0, %s174
    %s176 = sphi 0, %s174
    %s177 = sphi 0, %s176
    %s191 = sphi 0, %s177
    %s197 = sphi 0, %s199
    %s200 = sphi 0, %s197
    %s201 = sphi 0, %s200
    %s217 = sphi 0, %s201
  $region4: #{conv_deconv_block_forward.1} parent=0 // loop_header_branch
    %17 = sbr.rel (%p15) target = $region8
  $region5: #{conv_deconv_block_forward.1} parent=0 // loop_body
    %s19 = ssub.s32 %s14, 1
    %s20 = ssub.s32 %s14, 2
    %s21 = sadd.s32 %s14, 1
    %s22 = ssub.s32 %s14, %s21
    %p23 = scmp.eq.s32.totalorder %s22, 0
    %s25 = sadd.s32 %s24, 1
    %s26 = scalar_select %p23, %s24, %s25
    %p29 = pneg %p23
    %p30 = scmp.eq.s32.totalorder %s14, 1
    %p31 = por %p29, %p30
    %p32 = scmp.ne.s32.totalorder %s24, %s27
    %p33 = scmp.eq.s32.totalorder %s14, 0
    %p34 = por %p32, %p33
    %p35 = scmp.ne.s32.totalorder %s24, %s27
    %p36 = scmp.eq.s32.totalorder %s19, 1
    %p37 = por %p35, %p36
    %p38 = scmp.ne.s32.totalorder %s27, %s28
    %p39 = scmp.eq.s32.totalorder %s19, 0
    %p40 = por %p38, %p39
    %p41 = scmp.ne.s32.totalorder %s27, %s28
    %p42 = scmp.eq.s32.totalorder %s20, 1
    %p43 = por %p41, %p42
    %p45 = scmp.ne.s32.totalorder %s28, %s44
    %p46 = scmp.eq.s32.totalorder %s20, 0
    %p47 = por %p45, %p46
    %s49 = sadd.s32 %s48, 1
    %p52 = scmp.eq.s32.totalorder %s14, 1
    %p53 = scmp.ne.s32.totalorder %s48, %s50
    %p54 = scmp.eq.s32.totalorder %s14, 0
    %p55 = por %p53, %p54
    %p56 = scmp.ne.s32.totalorder %s48, %s50
    %p57 = scmp.eq.s32.totalorder %s19, 1
    %p58 = por %p56, %p57
    %p59 = scmp.ne.s32.totalorder %s50, %s51
    %p60 = scmp.eq.s32.totalorder %s19, 0
    %p61 = por %p59, %p60
    %p62 = scmp.ne.s32.totalorder %s50, %s51
    %p63 = scmp.eq.s32.totalorder %s20, 1
    %p64 = por %p62, %p63
    %p66 = scmp.ne.s32.totalorder %s51, %s65
    %p67 = scmp.eq.s32.totalorder %s20, 0
    %p68 = por %p66, %p67
    %s70 = sadd.s32 %s69, 1
    %p73 = scmp.eq.s32.totalorder %s14, 1
    %p74 = scmp.ne.s32.totalorder %s69, %s71
    %p75 = scmp.eq.s32.totalorder %s14, 0
    %p76 = por %p74, %p75
    %p77 = scmp.ne.s32.totalorder %s69, %s71
    %p78 = scmp.eq.s32.totalorder %s19, 1
    %p79 = por %p77, %p78
    %p80 = scmp.ne.s32.totalorder %s71, %s72
    %p81 = scmp.eq.s32.totalorder %s19, 0
    %p82 = por %p80, %p81
    %p83 = scmp.ne.s32.totalorder %s71, %s72
    %p84 = scmp.eq.s32.totalorder %s20, 1
    %p85 = por %p83, %p84
    %p87 = scmp.ne.s32.totalorder %s72, %s86
    %p88 = scmp.eq.s32.totalorder %s20, 0
    %p89 = por %p87, %p88
    %s91 = sadd.s32 %s90, 1
    %p94 = scmp.eq.s32.totalorder %s14, 1
    %p95 = scmp.ne.s32.totalorder %s90, %s92
    %p96 = scmp.eq.s32.totalorder %s14, 0
    %p97 = por %p95, %p96
    %p98 = scmp.ne.s32.totalorder %s90, %s92
    %p99 = scmp.eq.s32.totalorder %s19, 1
    %p100 = por %p98, %p99
    %p101 = scmp.ne.s32.totalorder %s92, %s93
    %p102 = scmp.eq.s32.totalorder %s19, 0
    %p103 = por %p101, %p102
    %p104 = scmp.ne.s32.totalorder %s92, %s93
    %p105 = scmp.eq.s32.totalorder %s20, 1
    %p106 = por %p104, %p105
    %p108 = scmp.ne.s32.totalorder %s93, %s107
    %p109 = scmp.eq.s32.totalorder %s20, 0
    %p110 = por %p108, %p109
    %s112 = sadd.s32 %s111, 1
    %p115 = scmp.eq.s32.totalorder %s14, 1
    %p116 = scmp.ne.s32.totalorder %s111, %s113
    %p117 = scmp.eq.s32.totalorder %s14, 0
    %p118 = por %p116, %p117
    %p119 = scmp.ne.s32.totalorder %s111, %s113
    %p120 = scmp.eq.s32.totalorder %s19, 1
    %p121 = por %p119, %p120
    %p122 = scmp.ne.s32.totalorder %s113, %s114
    %p123 = scmp.eq.s32.totalorder %s19, 0
    %p124 = por %p122, %p123
    %p125 = scmp.ne.s32.totalorder %s113, %s114
    %p126 = scmp.eq.s32.totalorder %s20, 1
    %p127 = por %p125, %p126
    %p129 = scmp.ne.s32.totalorder %s114, %s128
    %p130 = scmp.eq.s32.totalorder %s20, 0
    %p131 = por %p129, %p130
    %s133 = sadd.s32 %s132, 1
    %p136 = scmp.eq.s32.totalorder %s14, 1
    %p137 = scmp.ne.s32.totalorder %s132, %s134
    %p138 = scmp.eq.s32.totalorder %s14, 0
    %p139 = por %p137, %p138
    %p140 = scmp.ne.s32.totalorder %s132, %s134
    %p141 = scmp.eq.s32.totalorder %s19, 1
    %p142 = por %p140, %p141
    %p143 = scmp.ne.s32.totalorder %s134, %s135
    %p144 = scmp.eq.s32.totalorder %s19, 0
    %p145 = por %p143, %p144
    %p146 = scmp.ne.s32.totalorder %s134, %s135
    %p147 = scmp.eq.s32.totalorder %s20, 1
    %p148 = por %p146, %p147
    %p150 = scmp.ne.s32.totalorder %s135, %s149
    %p151 = scmp.eq.s32.totalorder %s20, 0
    %p152 = por %p150, %p151
    %s154 = sadd.s32 %s153, 1
    %p157 = scmp.eq.s32.totalorder %s14, 1
    %p158 = scmp.ne.s32.totalorder %s153, %s155
    %p159 = scmp.eq.s32.totalorder %s14, 0
    %p160 = por %p158, %p159
    %p161 = scmp.ne.s32.totalorder %s153, %s155
    %p162 = scmp.eq.s32.totalorder %s19, 1
    %p163 = por %p161, %p162
    %p164 = scmp.ne.s32.totalorder %s155, %s156
    %p165 = scmp.eq.s32.totalorder %s19, 0
    %p166 = por %p164, %p165
    %p167 = scmp.ne.s32.totalorder %s155, %s156
    %p168 = scmp.eq.s32.totalorder %s20, 1
    %p169 = por %p167, %p168
    %p171 = scmp.ne.s32.totalorder %s156, %s170
    %p172 = scmp.eq.s32.totalorder %s20, 0
    %p173 = por %p171, %p172
    %s175 = sadd.s32 %s174, 1
    %p178 = scmp.eq.s32.totalorder %s14, 1
    %p179 = scmp.ne.s32.totalorder %s174, %s176
    %p180 = scmp.eq.s32.totalorder %s14, 0
    %p181 = por %p179, %p180
    %p182 = scmp.ne.s32.totalorder %s174, %s176
    %p183 = scmp.eq.s32.totalorder %s19, 1
    %p184 = por %p182, %p183
    %p185 = scmp.ne.s32.totalorder %s176, %s177
    %p186 = scmp.eq.s32.totalorder %s19, 0
    %p187 = por %p185, %p186
    %p188 = scmp.ne.s32.totalorder %s176, %s177
    %p189 = scmp.eq.s32.totalorder %s20, 1
    %p190 = por %p188, %p189
    %p192 = scmp.ne.s32.totalorder %s177, %s191
    %p193 = scmp.eq.s32.totalorder %s20, 0
    %p194 = por %p192, %p193
    %s195 = ssub.s32 %s14, %s21
    %p196 = scmp.eq.s32.totalorder %s195, 0
    %s198 = sadd.s32 %s197, 1
    %s199 = scalar_select %p196, %s197, %s198
    %p202 = pneg %p196
    %p203 = scmp.eq.s32.totalorder %s14, 1
    %p204 = por %p202, %p203
    %p205 = scmp.ne.s32.totalorder %s197, %s200
    %p206 = scmp.eq.s32.totalorder %s14, 0
    %p207 = por %p205, %p206
    %p208 = scmp.ne.s32.totalorder %s197, %s200
    %p209 = scmp.eq.s32.totalorder %s19, 1
    %p210 = por %p208, %p209
    %p211 = scmp.ne.s32.totalorder %s200, %s201
    %p212 = scmp.eq.s32.totalorder %s19, 0
    %p213 = por %p211, %p212
    %p214 = scmp.ne.s32.totalorder %s200, %s201
    %p215 = scmp.eq.s32.totalorder %s20, 1
    %p216 = por %p214, %p215
    %p218 = scmp.ne.s32.totalorder %s201, %s217
    %p219 = scmp.eq.s32.totalorder %s20, 0
    %p220 = por %p218, %p219
    %p221 = scmp.le.s32.totalorder 1, %s14
    %p222 = scmp.lt.s32.totalorder %s14, 3
    %p223 = pnand %p221, %p222
    %p224 = pneg %p223
    // Predicated region
    $region9: #{conv_deconv_block_forward.1} parent=5 // pred_check
      _
    $region10: #{conv_deconv_block_forward.1} parent=5 // pred_check_branch
      %226 = sbr.rel (%p223) target = $region12
    $region11: #{conv_deconv_block_forward.1} parent=5 // pred_region
      %s227 = ssub.s32 %s14, 1
      // Predicated region
      $region13: #{conv_deconv_block_forward.1} parent=11 // pred_check
        %p228 = pneg %p61
      $region14: #{conv_deconv_block_forward.1} parent=11 // pred_check_branch
        %230 = sbr.rel (%p228) target = $region16
      $region15: #{conv_deconv_block_forward.1} parent=11 // pred_region
        _
      $region16: #{conv_deconv_block_forward.1} parent=11 // pred_fallthru
        _
      // Predicated region
      $region17: #{conv_deconv_block_forward.1} parent=11 // pred_check
        %p231 = pneg %p82
      $region18: #{conv_deconv_block_forward.1} parent=11 // pred_check_branch
        %233 = sbr.rel (%p231) target = $region20
      $region19: #{conv_deconv_block_forward.1} parent=11 // pred_region
        _
      $region20: #{conv_deconv_block_forward.1} parent=11 // pred_fallthru
        _
      // Predicated region
      $region21: #{conv_deconv_block_forward.1} parent=11 // pred_check
        %p234 = pneg %p103
      $region22: #{conv_deconv_block_forward.1} parent=11 // pred_check_branch
        %236 = sbr.rel (%p234) target = $region24
      $region23: #{conv_deconv_block_forward.1} parent=11 // pred_region
        _
      $region24: #{conv_deconv_block_forward.1} parent=11 // pred_fallthru
        _
      // Predicated region
      $region25: #{conv_deconv_block_forward.1} parent=11 // pred_check
        %p237 = pneg %p124
      $region26: #{conv_deconv_block_forward.1} parent=11 // pred_check_branch
        %239 = sbr.rel (%p237) target = $region28
      $region27: #{conv_deconv_block_forward.1} parent=11 // pred_region
        _
      $region28: #{conv_deconv_block_forward.1} parent=11 // pred_fallthru
        _
      // Predicated region
      $region29: #{conv_deconv_block_forward.1} parent=11 // pred_check
        %p240 = pneg %p145
      $region30: #{conv_deconv_block_forward.1} parent=11 // pred_check_branch
        %242 = sbr.rel (%p240) target = $region32
      $region31: #{conv_deconv_block_forward.1} parent=11 // pred_region
        _
      $region32: #{conv_deconv_block_forward.1} parent=11 // pred_fallthru
        _
      // Predicated region
      $region33: #{conv_deconv_block_forward.1} parent=11 // pred_check
        %p243 = pneg %p166
      $region34: #{conv_deconv_block_forward.1} parent=11 // pred_check_branch
        %245 = sbr.rel (%p243) target = $region36
      $region35: #{conv_deconv_block_forward.1} parent=11 // pred_region
        _
      $region36: #{conv_deconv_block_forward.1} parent=11 // pred_fallthru
        _
      // Predicated region
      $region37: #{conv_deconv_block_forward.1} parent=11 // pred_check
        %p246 = pneg %p187
      $region38: #{conv_deconv_block_forward.1} parent=11 // pred_check_branch
        %248 = sbr.rel (%p246) target = $region40
      $region39: #{conv_deconv_block_forward.1} parent=11 // pred_region
        _
      $region40: #{conv_deconv_block_forward.1} parent=11 // pred_fallthru
        _
    $region12: #{conv_deconv_block_forward.1} parent=5 // pred_fallthru
      _
    %p249 = scmp.lt.s32.totalorder %s14, 2
    // Predicated region
    $region41: #{conv_deconv_block_forward.1} parent=5 // pred_check
      %p250 = pneg %p249
    $region42: #{conv_deconv_block_forward.1} parent=5 // pred_check_branch
      %252 = sbr.rel (%p250) target = $region44
    $region43: #{conv_deconv_block_forward.1} parent=5 // pred_region
      // Predicated region
      $region45: #{conv_deconv_block_forward.1} parent=43 // pred_check
        %p253 = pneg %p34
      $region46: #{conv_deconv_block_forward.1} parent=43 // pred_check_branch
        %255 = sbr.rel (%p253) target = $region48
      $region47: #{conv_deconv_block_forward.1} parent=43 // pred_region
        %p256 = scmp.lt.s32.totalorder %s14, 1
        %s257 = scalar_select %p256, %s14, 1
        %s258 = smul.addr %s257, 6
        %s259 = smul.addr %s258, 4
        %s260 = scalar_lea.vmem %s0, %s259
      $region48: #{conv_deconv_block_forward.1} parent=43 // pred_fallthru
        _
    $region44: #{conv_deconv_block_forward.1} parent=5 // pred_fallthru
      _
    %p261 = scmp.le.s32.totalorder 1, %s14
    %p262 = scmp.lt.s32.totalorder %s14, 3
    %p263 = pnand %p261, %p262
    %p264 = pneg %p263
    // Predicated region
    $region49: #{conv_deconv_block_forward.1} parent=5 // pred_check
      _
    $region50: #{conv_deconv_block_forward.1} parent=5 // pred_check_branch
      %266 = sbr.rel (%p263) target = $region52
    $region51: #{conv_deconv_block_forward.1} parent=5 // pred_region
      %s267 = ssub.s32 %s14, 1
      %p268 = scmp.lt.s32.totalorder %s19, 1
      %s269 = scalar_select %p268, %s19, 1
      %s270 = smul.addr %s269, 6
      %s271 = smul.addr %s270, 4
      %s272 = scalar_lea.vmem %s0, %s271
      %p273 = pneg %p40
      %p274 = pneg %p37
      %p275 = pneg %p61
      %p276 = pneg %p58
      %p277 = pneg %p82
      %p278 = pneg %p79
      %p279 = pneg %p103
      %p280 = pneg %p100
      %p281 = pneg %p124
      %p282 = pneg %p121
      %p283 = pneg %p145
      %p284 = pneg %p142
      %p285 = pneg %p166
      %p286 = pneg %p163
      %p287 = pneg %p187
      %p288 = pneg %p184
      %p289 = pneg %p213
      %p290 = pneg %p210
      %p291 = scmp.lt.s32.totalorder %s19, 1
      %s292 = scalar_select %p291, %s19, 1
      %s293 = smul.addr %s292, 3
      %s294 = smul.addr %s293, 8
      %s295 = scalar_lea.vmem %s8, %s294
      %p296 = scmp.lt.s32.totalorder %s19, 1
      %s297 = scalar_select %p296, %s19, 1
      %s298 = smul.addr %s297, 6
      %s299 = smul.addr %s298, 4
      %s300 = scalar_lea.vmem %s0, %s299
      %p301 = scmp.lt.s32.totalorder %s19, 1
      %s302 = scalar_select %p301, %s19, 1
      %s303 = smul.addr %s302, 3
      %s304 = smul.addr %s303, 8
      %s305 = scalar_lea.vmem %s8, %s304
      %306 = vst [vmem:[#allocation2] sm:$0x1] 0.0
      %307 = vst [vmem:[#allocation2 + $0x13] sm:$0x1] 0.0
      %v308 = vld [vmem:[%s1] sm:$0xff]
      %v309 = vld [vmem:[%s1 + $0x8] sm:$0xff]
      %v310 = vld [vmem:[%s1 + $0x10] sm:$0x3]
      %v311 = vld [vmem:[%s300] sm:$0xff]
      %v312 = vld [vmem:[%s300 + $0x8] sm:$0xff]
      %v313 = vld [vmem:[%s300 + $0x10] sm:$0x11]
      %v314 = vld [vmem:[%s2] sm:$0xf]
      %v315 = vld [vmem:[%s2 + $0x4] sm:$0xf]
      %v316 = vld [vmem:[%s2 + $0x8] sm:$0xf]
      %v317 = vld [vmem:[%s2 + $0xc] sm:$0xf]
      %v318 = vld [vmem:[%s2 + $0x10] sm:$0xf]
      %v319 = vld [vmem:[%s2 + $0x14] sm:$0xf]
      %v320 = vld [vmem:[%s2 + $0x18] sm:$0xf]
      %v321 = vld [vmem:[%s2 + $0x1c] sm:$0xf]
      %v322 = vld [vmem:[%s2 + $0x20] sm:$0xf]
      %v323 = vld [vmem:[%s2 + $0x24] sm:$0xf]
      %v324 = vld [vmem:[%s2 + $0x28] sm:$0xf]
      %v325 = vld [vmem:[%s2 + $0x2c] sm:$0xf]
      %v326 = vld [vmem:[%s2 + $0x30] sm:$0xf]
      %v327 = vld [vmem:[%s2 + $0x34] sm:$0xf]
      %v328 = vld [vmem:[%s2 + $0x38] sm:$0xf]
      %v329 = vld [vmem:[%s2 + $0x3c] sm:$0xf]
      %v330 = vld [vmem:[%s2 + $0x40] sm:$0xf]
      %v331 = vld [vmem:[%s2 + $0x44] sm:$0xf]
      %v332 = vld [vmem:[%s2 + $0x48] sm:$0xf]
      %v333 = vld [vmem:[%s2 + $0x4c] sm:$0xf]
      %v334 = vld [vmem:[%s2 + $0x50] sm:$0xf]
      %v335 = vld [vmem:[%s2 + $0x54] sm:$0xf]
      %v336 = vld [vmem:[%s2 + $0x58] sm:$0xf]
      %v337 = vld [vmem:[%s2 + $0x5c] sm:$0xf]
      %v338 = vld [vmem:[%s2 + $0x60] sm:$0xf]
      %v339 = vld [vmem:[%s2 + $0x64] sm:$0xf]
      %v340 = vld [vmem:[%s2 + $0x68] sm:$0xf]
      %v341 = vld [vmem:[%s2 + $0x6c] sm:$0xf]
      %v342 = vld [vmem:[%s2 + $0x70] sm:$0xf]
      %v343 = vld [vmem:[%s2 + $0x74] sm:$0xf]
      %v344 = vld [vmem:[%s2 + $0x78] sm:$0xf]
      %v345 = vld [vmem:[%s2 + $0x7c] sm:$0xf]
      %v346 = vld [vmem:[%s300 + $0x10] sm:$0x33]
      %s347 = scalar_lea.vmem %s2, 128
      %v348 = vld [vmem:[%s347] sm:$0xf]
      %v349 = vld [vmem:[%s347 + $0x4] sm:$0xf]
      %v350 = vld [vmem:[%s347 + $0x8] sm:$0xf]
      %v351 = vld [vmem:[%s347 + $0xc] sm:$0xf]
      %v352 = vld [vmem:[%s347 + $0x10] sm:$0xf]
      %v353 = vld [vmem:[%s347 + $0x14] sm:$0xf]
      %v354 = vld [vmem:[%s347 + $0x18] sm:$0xf]
      %v355 = vld [vmem:[%s347 + $0x1c] sm:$0xf]
      %v356 = vld [vmem:[%s347 + $0x20] sm:$0xf]
      %v357 = vld [vmem:[%s347 + $0x24] sm:$0xf]
      %v358 = vld [vmem:[%s347 + $0x28] sm:$0xf]
      %v359 = vld [vmem:[%s347 + $0x2c] sm:$0xf]
      %v360 = vld [vmem:[%s347 + $0x30] sm:$0xf]
      %v361 = vld [vmem:[%s347 + $0x34] sm:$0xf]
      %v362 = vld [vmem:[%s347 + $0x38] sm:$0xf]
      %v363 = vld [vmem:[%s347 + $0x3c] sm:$0xf]
      %v364 = vld [vmem:[%s347 + $0x40] sm:$0xf]
      %v365 = vld [vmem:[%s347 + $0x44] sm:$0xf]
      %v366 = vld [vmem:[%s347 + $0x48] sm:$0xf]
      %v367 = vld [vmem:[%s347 + $0x4c] sm:$0xf]
      %v368 = vld [vmem:[%s347 + $0x50] sm:$0xf]
      %v369 = vld [vmem:[%s347 + $0x54] sm:$0xf]
      %v370 = vld [vmem:[%s347 + $0x58] sm:$0xf]
      %v371 = vld [vmem:[%s347 + $0x5c] sm:$0xf]
      %v372 = vld [vmem:[%s347 + $0x60] sm:$0xf]
      %v373 = vld [vmem:[%s347 + $0x64] sm:$0xf]
      %v374 = vld [vmem:[%s347 + $0x68] sm:$0xf]
      %v375 = vld [vmem:[%s347 + $0x6c] sm:$0xf]
      %v376 = vld [vmem:[%s347 + $0x70] sm:$0xf]
      %v377 = vld [vmem:[%s347 + $0x74] sm:$0xf]
      %v378 = vld [vmem:[%s347 + $0x78] sm:$0xf]
      %v379 = vld [vmem:[%s347 + $0x7c] sm:$0xf]
      %v383 = vunpack.c.l.b16 %v311
      %v384 = vunpack.c.h.b16 %v311
      %v385 = vunpack.c.l.b16 %v312
      %v386 = vunpack.c.h.b16 %v312
      %v387 = vunpack.c.l.b16 %v346
      %v388 = vunpack.c.h.b16 %v346
      %v389 = vpack.c.b16 %v385, %v383
      %v390 = vpack.c.b16 %v386, %v384
      %v391 = vpack.c.b16 %v387, %v387
      %v392 = vpack.c.b16 %v388, %v388
      %vm393 = vsmask.f32 7424
      %v395 = vshrl.u32 %v389, 16
      %v397 = vshll.u32 %v389, 16
      %v399 = vrot.slane %v397, 1
      %v400 = vor.u32 %v395, %v399
      %v402 = vshll.u32 %v391, 16
      %v404 = vrot.slane %v402, 1
      %v405 = vsel %vm393, %v400, %v404
      %v407 = vshrl.u32 %v390, 16
      %v409 = vshll.u32 %v390, 16
      %v411 = vrot.slane %v409, 1
      %v412 = vor.u32 %v407, %v411
      %v414 = vshll.u32 %v392, 16
      %v416 = vrot.slane %v414, 1
      %v417 = vsel %vm393, %v412, %v416
      %v418 = vshrl.u32 %v391, 16
      %v420 = vor.u32 %v418, %v404
      %v421 = vshrl.u32 %v392, 16
      %v423 = vor.u32 %v421, %v416
      %v460 = vunpack.c.l.b16 %v348
      %v461 = vunpack.c.l.b16 %v349
      %v462 = vunpack.c.l.b16 %v350
      %v463 = vunpack.c.l.b16 %v351
      %v464 = vunpack.c.l.b16 %v352
      %v465 = vunpack.c.l.b16 %v353
      %v466 = vunpack.c.l.b16 %v354
      %v467 = vunpack.c.l.b16 %v355
      %v468 = vunpack.c.l.b16 %v356
      %v469 = vunpack.c.l.b16 %v357
      %v470 = vunpack.c.l.b16 %v358
      %v471 = vunpack.c.l.b16 %v359
      %v472 = vunpack.c.l.b16 %v360
      %v473 = vunpack.c.l.b16 %v361
      %v474 = vunpack.c.l.b16 %v362
      %v475 = vunpack.c.l.b16 %v363
      %v476 = vunpack.c.l.b16 %v364
      %v477 = vunpack.c.l.b16 %v365
      %v478 = vunpack.c.l.b16 %v366
      %v479 = vunpack.c.l.b16 %v367
      %v480 = vunpack.c.l.b16 %v368
      %v481 = vunpack.c.l.b16 %v369
      %v482 = vunpack.c.l.b16 %v370
      %v483 = vunpack.c.l.b16 %v371
      %v484 = vunpack.c.l.b16 %v372
      %v485 = vunpack.c.l.b16 %v373
      %v486 = vunpack.c.l.b16 %v374
      %v487 = vunpack.c.l.b16 %v375
      %v488 = vunpack.c.l.b16 %v376
      %v489 = vunpack.c.l.b16 %v377
      %v490 = vunpack.c.l.b16 %v378
      %v491 = vunpack.c.l.b16 %v379
      %v492 = vpack.c.b16 %v461, %v460
      %v493 = vpack.c.b16 %v463, %v462
      %v494 = vpack.c.b16 %v465, %v464
      %v495 = vpack.c.b16 %v467, %v466
      %v496 = vpack.c.b16 %v469, %v468
      %v497 = vpack.c.b16 %v471, %v470
      %v498 = vpack.c.b16 %v473, %v472
      %v499 = vpack.c.b16 %v475, %v474
      %v500 = vpack.c.b16 %v477, %v476
      %v501 = vpack.c.b16 %v479, %v478
      %v502 = vpack.c.b16 %v481, %v480
      %v503 = vpack.c.b16 %v483, %v482
      %v504 = vpack.c.b16 %v485, %v484
      %v505 = vpack.c.b16 %v487, %v486
      %v506 = vpack.c.b16 %v489, %v488
      %v507 = vpack.c.b16 %v491, %v490
      %524 = vmatpush.bf16.msra.mxu0 %v499
      %525 = vmatpush.bf16.msra.mxu0 %v498
      %526 = vmatpush.bf16.msra.mxu0 %v497
      %527 = vmatpush.bf16.msra.mxu0 %v496
      %528 = vmatpush.bf16.msra.mxu0 %v495
      %529 = vmatpush.bf16.msra.mxu0 %v494
      %530 = vmatpush.bf16.msra.mxu0 %v493
      %531 = vmatpush.bf16.msra.mxu0 %v492
      %532 = vmatmul.bf16.gmra.mxu0 %v405
      %v533 = vpop.f32.mrf.mxu0
      %v534 = vadd.f32 0.0, %v533
      %v535 = vpop.f32.mrf.mxu0
      %v536 = vadd.f32 0.0, %v535
      %537 = vmatmul.bf16.gmra.mxu0 %v420
      %v538 = vpop.f32.mrf.mxu0
      %v539 = vadd.f32 0.0, %v538
      %v540 = vpop.f32.mrf.mxu0
      %541 = vdwg.mxu0
      %542 = vmatpush.bf16.msra.mxu0 %v507
      %543 = vmatpush.bf16.msra.mxu0 %v506
      %544 = vmatpush.bf16.msra.mxu0 %v505
      %545 = vmatpush.bf16.msra.mxu0 %v504
      %546 = vmatpush.bf16.msra.mxu0 %v503
      %547 = vmatpush.bf16.msra.mxu0 %v502
      %548 = vmatpush.bf16.msra.mxu0 %v501
      %549 = vmatpush.bf16.msra.mxu0 %v500
      %550 = vmatmul.bf16.gmra.mxu0 %v417
      %v551 = vpop.f32.mrf.mxu0
      %v552 = vadd.f32 %v534, %v551
      %v553 = vpop.f32.mrf.mxu0
      %v554 = vadd.f32 %v536, %v553
      %555 = vmatmul.bf16.gmra.mxu0 %v423
      %v556 = vpop.f32.mrf.mxu0
      %v557 = vadd.f32 %v539, %v556
      %v558 = vpop.f32.mrf.mxu0
      %559 = vdwg.mxu0
      %v561 = vunpack.c.l.b16 %v313
      %v562 = vunpack.c.h.b16 %v313
      %v563 = vpack.c.b16 %v561, %v561
      %v564 = vpack.c.b16 %v562, %v562
      %v601 = vunpack.c.l.b16 %v314
      %v602 = vunpack.c.l.b16 %v315
      %v603 = vunpack.c.l.b16 %v316
      %v604 = vunpack.c.l.b16 %v317
      %v605 = vunpack.c.l.b16 %v318
      %v606 = vunpack.c.l.b16 %v319
      %v607 = vunpack.c.l.b16 %v320
      %v608 = vunpack.c.l.b16 %v321
      %v609 = vunpack.c.l.b16 %v322
      %v610 = vunpack.c.l.b16 %v323
      %v611 = vunpack.c.l.b16 %v324
      %v612 = vunpack.c.l.b16 %v325
      %v613 = vunpack.c.l.b16 %v326
      %v614 = vunpack.c.l.b16 %v327
      %v615 = vunpack.c.l.b16 %v328
      %v616 = vunpack.c.l.b16 %v329
      %v617 = vunpack.c.l.b16 %v330
      %v618 = vunpack.c.l.b16 %v331
      %v619 = vunpack.c.l.b16 %v332
      %v620 = vunpack.c.l.b16 %v333
      %v621 = vunpack.c.l.b16 %v334
      %v622 = vunpack.c.l.b16 %v335
      %v623 = vunpack.c.l.b16 %v336
      %v624 = vunpack.c.l.b16 %v337
      %v625 = vunpack.c.l.b16 %v338
      %v626 = vunpack.c.l.b16 %v339
      %v627 = vunpack.c.l.b16 %v340
      %v628 = vunpack.c.l.b16 %v341
      %v629 = vunpack.c.l.b16 %v342
      %v630 = vunpack.c.l.b16 %v343
      %v631 = vunpack.c.l.b16 %v344
      %v632 = vunpack.c.l.b16 %v345
      %v633 = vpack.c.b16 %v602, %v601
      %v634 = vpack.c.b16 %v604, %v603
      %v635 = vpack.c.b16 %v606, %v605
      %v636 = vpack.c.b16 %v608, %v607
      %v637 = vpack.c.b16 %v610, %v609
      %v638 = vpack.c.b16 %v612, %v611
      %v639 = vpack.c.b16 %v614, %v613
      %v640 = vpack.c.b16 %v616, %v615
      %v641 = vpack.c.b16 %v618, %v617
      %v642 = vpack.c.b16 %v620, %v619
      %v643 = vpack.c.b16 %v622, %v621
      %v644 = vpack.c.b16 %v624, %v623
      %v645 = vpack.c.b16 %v626, %v625
      %v646 = vpack.c.b16 %v628, %v627
      %v647 = vpack.c.b16 %v630, %v629
      %v648 = vpack.c.b16 %v632, %v631
      %665 = vmatpush.bf16.msra.mxu0 %v640
      %666 = vmatpush.bf16.msra.mxu0 %v639
      %667 = vmatpush.bf16.msra.mxu0 %v638
      %668 = vmatpush.bf16.msra.mxu0 %v637
      %669 = vmatpush.bf16.msra.mxu0 %v636
      %670 = vmatpush.bf16.msra.mxu0 %v635
      %671 = vmatpush.bf16.msra.mxu0 %v634
      %672 = vmatpush.bf16.msra.mxu0 %v633
      %673 = vmatmul.bf16.gmra.mxu0 %v389
      %v674 = vpop.f32.mrf.mxu0
      %v675 = vadd.f32 %v552, %v674
      %v676 = vpop.f32.mrf.mxu0
      %v677 = vadd.f32 %v554, %v676
      %678 = vmatmul.bf16.gmra.mxu0 %v563
      %v679 = vpop.f32.mrf.mxu0
      %v680 = vadd.f32 %v557, %v679
      %v681 = vpop.f32.mrf.mxu0
      %682 = vdwg.mxu0
      %683 = vmatpush.bf16.msra.mxu0 %v648
      %684 = vmatpush.bf16.msra.mxu0 %v647
      %685 = vmatpush.bf16.msra.mxu0 %v646
      %686 = vmatpush.bf16.msra.mxu0 %v645
      %687 = vmatpush.bf16.msra.mxu0 %v644
      %688 = vmatpush.bf16.msra.mxu0 %v643
      %689 = vmatpush.bf16.msra.mxu0 %v642
      %690 = vmatpush.bf16.msra.mxu0 %v641
      %691 = vmatmul.bf16.gmra.mxu0 %v390
      %v692 = vpop.f32.mrf.mxu0
      %v693 = vadd.f32 %v675, %v692
      %v694 = vpop.f32.mrf.mxu0
      %v695 = vadd.f32 %v677, %v694
      %696 = vmatmul.bf16.gmra.mxu0 %v564
      %v697 = vpop.f32.mrf.mxu0
      %v698 = vadd.f32 %v680, %v697
      %v699 = vpop.f32.mrf.mxu0
      %700 = vdwg.mxu0
      %v701 = vld [vmem:[%s3] sm:$0x1]
      %v703 = vperm.slane %v701, 0
      %v705 = vadd.f32 %v693, %v703
      %v706 = vadd.f32 %v695, %v703
      %v707 = vadd.f32 %v698, %v703
      %v708 = vmax.f32 %v705, 0.0
      %v709 = vmax.f32 %v706, 0.0
      %v710 = vmax.f32 %v707, 0.0
      %712 = vset.pattern.permute.xlu0 0
      %713 = vperm.xlu0 %712, %v308
      %v714 = vpop.permute.xlu0 %713
      %717 = vset.pattern.permute.xlu0 0
      %718 = vperm.xlu0 %717, %v309
      %v719 = vpop.permute.xlu0 %718
      %722 = vset.pattern.permute.xlu0 0
      %723 = vperm.xlu0 %722, %v310
      %v724 = vpop.permute.xlu0 %723
      %v726 = vmul.f32 %v708, %v714
      %v727 = vmul.f32 %v709, %v719
      %v728 = vmul.f32 %v710, %v724
      %729 = vst [vmem:[#allocation2 + $0x1] sm:$0xff] %v726
      %730 = vst [vmem:[#allocation2 + $0x9] sm:$0xff] %v727
      %731 = vst [vmem:[#allocation2 + $0x11] sm:$0x3] %v728
      %v732 = vld [vmem:[#allocation2] sm:$0xff]
      %v733 = vld [vmem:[#allocation2 + $0x8] sm:$0xff]
      %v734 = vld [vmem:[#allocation2 + $0x10] sm:$0x3]
      %v735 = vpack.c.bf16 %v733, %v732
      %v736 = vpack.c.bf16 %v734, %v734
      %v737 = vld [vmem:[%s4] sm:$0xf]
      %v738 = vld [vmem:[%s4 + $0x4] sm:$0xf]
      %v739 = vld [vmem:[%s4 + $0x8] sm:$0xf]
      %v740 = vld [vmem:[%s4 + $0xc] sm:$0xf]
      %v741 = vld [vmem:[%s4 + $0x10] sm:$0xf]
      %v742 = vld [vmem:[%s4 + $0x14] sm:$0xf]
      %v743 = vld [vmem:[%s4 + $0x18] sm:$0xf]
      %v744 = vld [vmem:[%s4 + $0x1c] sm:$0xf]
      %v745 = vld [vmem:[%s4 + $0x20] sm:$0xf]
      %v746 = vld [vmem:[%s4 + $0x24] sm:$0xf]
      %v747 = vld [vmem:[%s4 + $0x28] sm:$0xf]
      %v748 = vld [vmem:[%s4 + $0x2c] sm:$0xf]
      %v749 = vld [vmem:[%s4 + $0x30] sm:$0xf]
      %v750 = vld [vmem:[%s4 + $0x34] sm:$0xf]
      %v751 = vld [vmem:[%s4 + $0x38] sm:$0xf]
      %v752 = vld [vmem:[%s4 + $0x3c] sm:$0xf]
      %v753 = vld [vmem:[#allocation2 + $0x1] sm:$0xff]
      %v754 = vld [vmem:[#allocation2 + $0x9] sm:$0xff]
      %v755 = vld [vmem:[#allocation2 + $0x11] sm:$0x3]
      %v756 = vpack.c.bf16 %v754, %v753
      %v757 = vpack.c.bf16 %v755, %v755
      %s758 = scalar_lea.vmem %s4, 64
      %v759 = vld [vmem:[%s758] sm:$0xf]
      %v760 = vld [vmem:[%s758 + $0x4] sm:$0xf]
      %v761 = vld [vmem:[%s758 + $0x8] sm:$0xf]
      %v762 = vld [vmem:[%s758 + $0xc] sm:$0xf]
      %v763 = vld [vmem:[%s758 + $0x10] sm:$0xf]
      %v764 = vld [vmem:[%s758 + $0x14] sm:$0xf]
      %v765 = vld [vmem:[%s758 + $0x18] sm:$0xf]
      %v766 = vld [vmem:[%s758 + $0x1c] sm:$0xf]
      %v767 = vld [vmem:[%s758 + $0x20] sm:$0xf]
      %v768 = vld [vmem:[%s758 + $0x24] sm:$0xf]
      %v769 = vld [vmem:[%s758 + $0x28] sm:$0xf]
      %v770 = vld [vmem:[%s758 + $0x2c] sm:$0xf]
      %v771 = vld [vmem:[%s758 + $0x30] sm:$0xf]
      %v772 = vld [vmem:[%s758 + $0x34] sm:$0xf]
      %v773 = vld [vmem:[%s758 + $0x38] sm:$0xf]
      %v774 = vld [vmem:[%s758 + $0x3c] sm:$0xf]
      %v791 = vunpack.c.l.b16 %v759
      %v792 = vunpack.c.l.b16 %v760
      %v793 = vunpack.c.l.b16 %v761
      %v794 = vunpack.c.l.b16 %v762
      %v795 = vunpack.c.l.b16 %v763
      %v796 = vunpack.c.l.b16 %v764
      %v797 = vunpack.c.l.b16 %v765
      %v798 = vunpack.c.l.b16 %v766
      %v799 = vunpack.c.l.b16 %v767
      %v800 = vunpack.c.l.b16 %v768
      %v801 = vunpack.c.l.b16 %v769
      %v802 = vunpack.c.l.b16 %v770
      %v803 = vunpack.c.l.b16 %v771
      %v804 = vunpack.c.l.b16 %v772
      %v805 = vunpack.c.l.b16 %v773
      %v806 = vunpack.c.l.b16 %v774
      %v807 = vpack.c.b16 %v792, %v791
      %v808 = vpack.c.b16 %v794, %v793
      %v809 = vpack.c.b16 %v796, %v795
      %v810 = vpack.c.b16 %v798, %v797
      %v811 = vpack.c.b16 %v800, %v799
      %v812 = vpack.c.b16 %v802, %v801
      %v813 = vpack.c.b16 %v804, %v803
      %v814 = vpack.c.b16 %v806, %v805
      %823 = vmatpush.bf16.msra.mxu0 %v814
      %824 = vmatpush.bf16.msra.mxu0 %v813
      %825 = vmatpush.bf16.msra.mxu0 %v812
      %826 = vmatpush.bf16.msra.mxu0 %v811
      %827 = vmatpush.bf16.msra.mxu0 %v810
      %828 = vmatpush.bf16.msra.mxu0 %v809
      %829 = vmatpush.bf16.msra.mxu0 %v808
      %830 = vmatpush.bf16.msra.mxu0 %v807
      %831 = vmatmul.bf16.gmra.mxu0 %v756
      %v832 = vpop.f32.mrf.mxu0
      %v833 = vadd.f32 0.0, %v832
      %v834 = vpop.f32.mrf.mxu0
      %v835 = vadd.f32 0.0, %v834
      %836 = vmatmul.bf16.gmra.mxu0 %v757
      %v837 = vpop.f32.mrf.mxu0
      %v838 = vadd.f32 0.0, %v837
      %v839 = vpop.f32.mrf.mxu0
      %840 = vdwg.mxu0
      %v857 = vunpack.c.l.b16 %v737
      %v858 = vunpack.c.l.b16 %v738
      %v859 = vunpack.c.l.b16 %v739
      %v860 = vunpack.c.l.b16 %v740
      %v861 = vunpack.c.l.b16 %v741
      %v862 = vunpack.c.l.b16 %v742
      %v863 = vunpack.c.l.b16 %v743
      %v864 = vunpack.c.l.b16 %v744
      %v865 = vunpack.c.l.b16 %v745
      %v866 = vunpack.c.l.b16 %v746
      %v867 = vunpack.c.l.b16 %v747
      %v868 = vunpack.c.l.b16 %v748
      %v869 = vunpack.c.l.b16 %v749
      %v870 = vunpack.c.l.b16 %v750
      %v871 = vunpack.c.l.b16 %v751
      %v872 = vunpack.c.l.b16 %v752
      %v873 = vpack.c.b16 %v858, %v857
      %v874 = vpack.c.b16 %v860, %v859
      %v875 = vpack.c.b16 %v862, %v861
      %v876 = vpack.c.b16 %v864, %v863
      %v877 = vpack.c.b16 %v866, %v865
      %v878 = vpack.c.b16 %v868, %v867
      %v879 = vpack.c.b16 %v870, %v869
      %v880 = vpack.c.b16 %v872, %v871
      %889 = vmatpush.bf16.msra.mxu0 %v880
      %890 = vmatpush.bf16.msra.mxu0 %v879
      %891 = vmatpush.bf16.msra.mxu0 %v878
      %892 = vmatpush.bf16.msra.mxu0 %v877
      %893 = vmatpush.bf16.msra.mxu0 %v876
      %894 = vmatpush.bf16.msra.mxu0 %v875
      %895 = vmatpush.bf16.msra.mxu0 %v874
      %896 = vmatpush.bf16.msra.mxu0 %v873
      %897 = vmatmul.bf16.gmra.mxu0 %v735
      %v898 = vpop.f32.mrf.mxu0
      %v899 = vadd.f32 %v833, %v898
      %v900 = vpop.f32.mrf.mxu0
      %v901 = vadd.f32 %v835, %v900
      %902 = vmatmul.bf16.gmra.mxu0 %v736
      %v903 = vpop.f32.mrf.mxu0
      %v904 = vadd.f32 %v838, %v903
      %v905 = vpop.f32.mrf.mxu0
      %906 = vdwg.mxu0
      %v907 = vld [vmem:[#allocation2 + $0x2] sm:$0xff]
      %v908 = vld [vmem:[#allocation2 + $0xa] sm:$0xff]
      %v909 = vld [vmem:[#allocation2 + $0x12] sm:$0x3]
      %v910 = vpack.c.bf16 %v908, %v907
      %v911 = vpack.c.bf16 %v909, %v909
      %s912 = scalar_lea.vmem %s4, 128
      %v913 = vld [vmem:[%s912] sm:$0xf]
      %v914 = vld [vmem:[%s912 + $0x4] sm:$0xf]
      %v915 = vld [vmem:[%s912 + $0x8] sm:$0xf]
      %v916 = vld [vmem:[%s912 + $0xc] sm:$0xf]
      %v917 = vld [vmem:[%s912 + $0x10] sm:$0xf]
      %v918 = vld [vmem:[%s912 + $0x14] sm:$0xf]
      %v919 = vld [vmem:[%s912 + $0x18] sm:$0xf]
      %v920 = vld [vmem:[%s912 + $0x1c] sm:$0xf]
      %v921 = vld [vmem:[%s912 + $0x20] sm:$0xf]
      %v922 = vld [vmem:[%s912 + $0x24] sm:$0xf]
      %v923 = vld [vmem:[%s912 + $0x28] sm:$0xf]
      %v924 = vld [vmem:[%s912 + $0x2c] sm:$0xf]
      %v925 = vld [vmem:[%s912 + $0x30] sm:$0xf]
      %v926 = vld [vmem:[%s912 + $0x34] sm:$0xf]
      %v927 = vld [vmem:[%s912 + $0x38] sm:$0xf]
      %v928 = vld [vmem:[%s912 + $0x3c] sm:$0xf]
      %v945 = vunpack.c.l.b16 %v913
      %v946 = vunpack.c.l.b16 %v914
      %v947 = vunpack.c.l.b16 %v915
      %v948 = vunpack.c.l.b16 %v916
      %v949 = vunpack.c.l.b16 %v917
      %v950 = vunpack.c.l.b16 %v918
      %v951 = vunpack.c.l.b16 %v919
      %v952 = vunpack.c.l.b16 %v920
      %v953 = vunpack.c.l.b16 %v921
      %v954 = vunpack.c.l.b16 %v922
      %v955 = vunpack.c.l.b16 %v923
      %v956 = vunpack.c.l.b16 %v924
      %v957 = vunpack.c.l.b16 %v925
      %v958 = vunpack.c.l.b16 %v926
      %v959 = vunpack.c.l.b16 %v927
      %v960 = vunpack.c.l.b16 %v928
      %v961 = vpack.c.b16 %v946, %v945
      %v962 = vpack.c.b16 %v948, %v947
      %v963 = vpack.c.b16 %v950, %v949
      %v964 = vpack.c.b16 %v952, %v951
      %v965 = vpack.c.b16 %v954, %v953
      %v966 = vpack.c.b16 %v956, %v955
      %v967 = vpack.c.b16 %v958, %v957
      %v968 = vpack.c.b16 %v960, %v959
      %977 = vmatpush.bf16.msra.mxu0 %v968
      %978 = vmatpush.bf16.msra.mxu0 %v967
      %979 = vmatpush.bf16.msra.mxu0 %v966
      %980 = vmatpush.bf16.msra.mxu0 %v965
      %981 = vmatpush.bf16.msra.mxu0 %v964
      %982 = vmatpush.bf16.msra.mxu0 %v963
      %983 = vmatpush.bf16.msra.mxu0 %v962
      %984 = vmatpush.bf16.msra.mxu0 %v961
      %985 = vmatmul.bf16.gmra.mxu0 %v910
      %v986 = vpop.f32.mrf.mxu0
      %v987 = vadd.f32 0.0, %v986
      %v988 = vpop.f32.mrf.mxu0
      %v989 = vadd.f32 0.0, %v988
      %990 = vmatmul.bf16.gmra.mxu0 %v911
      %v991 = vpop.f32.mrf.mxu0
      %v992 = vadd.f32 0.0, %v991
      %v993 = vpop.f32.mrf.mxu0
      %994 = vdwg.mxu0
      %v995 = vadd.f32 %v899, %v987
      %v996 = vadd.f32 %v901, %v989
      %v997 = vadd.f32 %v904, %v992
      %v998 = vld [vmem:[%s5] sm:$0x1]
      %v1000 = vperm.slane %v998, 0
      %v1002 = vadd.f32 %v995, %v1000
      %v1003 = vadd.f32 %v996, %v1000
      %v1004 = vadd.f32 %v997, %v1000
      %v1005 = vmax.f32 %v1002, 0.0
      %v1006 = vmax.f32 %v1003, 0.0
      %v1007 = vmax.f32 %v1004, 0.0
      %v1008 = vmul.f32 %v1005, %v714
      %v1009 = vmul.f32 %v1006, %v719
      %v1010 = vmul.f32 %v1007, %v724
      %1011 = vst [vmem:[#allocation2 + $0x1] sm:$0xff] %v1008
      %1012 = vst [vmem:[#allocation2 + $0x9] sm:$0xff] %v1009
      %1013 = vst [vmem:[#allocation2 + $0x11] sm:$0x3] %v1010
      %v1014 = vld [vmem:[#allocation2] sm:$0xff]
      %v1015 = vld [vmem:[#allocation2 + $0x8] sm:$0xff]
      %v1016 = vld [vmem:[#allocation2 + $0x10] sm:$0x3]
      %v1017 = vpack.c.bf16 %v1015, %v1014
      %v1018 = vpack.c.bf16 %v1016, %v1016
      %v1019 = vld [vmem:[%s6] sm:$0xf]
      %v1020 = vld [vmem:[%s6 + $0x4] sm:$0xf]
      %v1021 = vld [vmem:[%s6 + $0x8] sm:$0xf]
      %v1022 = vld [vmem:[%s6 + $0xc] sm:$0xf]
      %v1023 = vld [vmem:[%s6 + $0x10] sm:$0xf]
      %v1024 = vld [vmem:[%s6 + $0x14] sm:$0xf]
      %v1025 = vld [vmem:[%s6 + $0x18] sm:$0xf]
      %v1026 = vld [vmem:[%s6 + $0x1c] sm:$0xf]
      %v1027 = vld [vmem:[%s6 + $0x20] sm:$0xf]
      %v1028 = vld [vmem:[%s6 + $0x24] sm:$0xf]
      %v1029 = vld [vmem:[%s6 + $0x28] sm:$0xf]
      %v1030 = vld [vmem:[%s6 + $0x2c] sm:$0xf]
      %v1031 = vld [vmem:[%s6 + $0x30] sm:$0xf]
      %v1032 = vld [vmem:[%s6 + $0x34] sm:$0xf]
      %v1033 = vld [vmem:[%s6 + $0x38] sm:$0xf]
      %v1034 = vld [vmem:[%s6 + $0x3c] sm:$0xf]
      %v1035 = vld [vmem:[#allocation2 + $0x1] sm:$0xff]
      %v1036 = vld [vmem:[#allocation2 + $0x9] sm:$0xff]
      %v1037 = vld [vmem:[#allocation2 + $0x11] sm:$0x3]
      %v1038 = vpack.c.bf16 %v1036, %v1035
      %v1039 = vpack.c.bf16 %v1037, %v1037
      %s1040 = scalar_lea.vmem %s6, 64
      %v1041 = vld [vmem:[%s1040] sm:$0xf]
      %v1042 = vld [vmem:[%s1040 + $0x4] sm:$0xf]
      %v1043 = vld [vmem:[%s1040 + $0x8] sm:$0xf]
      %v1044 = vld [vmem:[%s1040 + $0xc] sm:$0xf]
      %v1045 = vld [vmem:[%s1040 + $0x10] sm:$0xf]
      %v1046 = vld [vmem:[%s1040 + $0x14] sm:$0xf]
      %v1047 = vld [vmem:[%s1040 + $0x18] sm:$0xf]
      %v1048 = vld [vmem:[%s1040 + $0x1c] sm:$0xf]
      %v1049 = vld [vmem:[%s1040 + $0x20] sm:$0xf]
      %v1050 = vld [vmem:[%s1040 + $0x24] sm:$0xf]
      %v1051 = vld [vmem:[%s1040 + $0x28] sm:$0xf]
      %v1052 = vld [vmem:[%s1040 + $0x2c] sm:$0xf]
      %v1053 = vld [vmem:[%s1040 + $0x30] sm:$0xf]
      %v1054 = vld [vmem:[%s1040 + $0x34] sm:$0xf]
      %v1055 = vld [vmem:[%s1040 + $0x38] sm:$0xf]
      %v1056 = vld [vmem:[%s1040 + $0x3c] sm:$0xf]
      %v1073 = vunpack.c.l.b16 %v1041
      %v1074 = vunpack.c.l.b16 %v1042
      %v1075 = vunpack.c.l.b16 %v1043
      %v1076 = vunpack.c.l.b16 %v1044
      %v1077 = vunpack.c.l.b16 %v1045
      %v1078 = vunpack.c.l.b16 %v1046
      %v1079 = vunpack.c.l.b16 %v1047
      %v1080 = vunpack.c.l.b16 %v1048
      %v1081 = vunpack.c.l.b16 %v1049
      %v1082 = vunpack.c.l.b16 %v1050
      %v1083 = vunpack.c.l.b16 %v1051
      %v1084 = vunpack.c.l.b16 %v1052
      %v1085 = vunpack.c.l.b16 %v1053
      %v1086 = vunpack.c.l.b16 %v1054
      %v1087 = vunpack.c.l.b16 %v1055
      %v1088 = vunpack.c.l.b16 %v1056
      %v1089 = vpack.c.b16 %v1074, %v1073
      %v1090 = vpack.c.b16 %v1076, %v1075
      %v1091 = vpack.c.b16 %v1078, %v1077
      %v1092 = vpack.c.b16 %v1080, %v1079
      %v1093 = vpack.c.b16 %v1082, %v1081
      %v1094 = vpack.c.b16 %v1084, %v1083
      %v1095 = vpack.c.b16 %v1086, %v1085
      %v1096 = vpack.c.b16 %v1088, %v1087
      %1105 = vmatpush.bf16.msra.mxu0 %v1096
      %1106 = vmatpush.bf16.msra.mxu0 %v1095
      %1107 = vmatpush.bf16.msra.mxu0 %v1094
      %1108 = vmatpush.bf16.msra.mxu0 %v1093
      %1109 = vmatpush.bf16.msra.mxu0 %v1092
      %1110 = vmatpush.bf16.msra.mxu0 %v1091
      %1111 = vmatpush.bf16.msra.mxu0 %v1090
      %1112 = vmatpush.bf16.msra.mxu0 %v1089
      %1113 = vmatmul.bf16.gmra.mxu0 %v1038
      %v1114 = vpop.f32.mrf.mxu0
      %v1115 = vadd.f32 0.0, %v1114
      %v1116 = vpop.f32.mrf.mxu0
      %v1117 = vadd.f32 0.0, %v1116
      %1118 = vmatmul.bf16.gmra.mxu0 %v1039
      %v1119 = vpop.f32.mrf.mxu0
      %v1120 = vadd.f32 0.0, %v1119
      %v1121 = vpop.f32.mrf.mxu0
      %1122 = vdwg.mxu0
      %v1139 = vunpack.c.l.b16 %v1019
      %v1140 = vunpack.c.l.b16 %v1020
      %v1141 = vunpack.c.l.b16 %v1021
      %v1142 = vunpack.c.l.b16 %v1022
      %v1143 = vunpack.c.l.b16 %v1023
      %v1144 = vunpack.c.l.b16 %v1024
      %v1145 = vunpack.c.l.b16 %v1025
      %v1146 = vunpack.c.l.b16 %v1026
      %v1147 = vunpack.c.l.b16 %v1027
      %v1148 = vunpack.c.l.b16 %v1028
      %v1149 = vunpack.c.l.b16 %v1029
      %v1150 = vunpack.c.l.b16 %v1030
      %v1151 = vunpack.c.l.b16 %v1031
      %v1152 = vunpack.c.l.b16 %v1032
      %v1153 = vunpack.c.l.b16 %v1033
      %v1154 = vunpack.c.l.b16 %v1034
      %v1155 = vpack.c.b16 %v1140, %v1139
      %v1156 = vpack.c.b16 %v1142, %v1141
      %v1157 = vpack.c.b16 %v1144, %v1143
      %v1158 = vpack.c.b16 %v1146, %v1145
      %v1159 = vpack.c.b16 %v1148, %v1147
      %v1160 = vpack.c.b16 %v1150, %v1149
      %v1161 = vpack.c.b16 %v1152, %v1151
      %v1162 = vpack.c.b16 %v1154, %v1153
      %1171 = vmatpush.bf16.msra.mxu0 %v1162
      %1172 = vmatpush.bf16.msra.mxu0 %v1161
      %1173 = vmatpush.bf16.msra.mxu0 %v1160
      %1174 = vmatpush.bf16.msra.mxu0 %v1159
      %1175 = vmatpush.bf16.msra.mxu0 %v1158
      %1176 = vmatpush.bf16.msra.mxu0 %v1157
      %1177 = vmatpush.bf16.msra.mxu0 %v1156
      %1178 = vmatpush.bf16.msra.mxu0 %v1155
      %1179 = vmatmul.bf16.gmra.mxu0 %v1017
      %v1180 = vpop.f32.mrf.mxu0
      %v1181 = vadd.f32 %v1115, %v1180
      %v1182 = vpop.f32.mrf.mxu0
      %v1183 = vadd.f32 %v1117, %v1182
      %1184 = vmatmul.bf16.gmra.mxu0 %v1018
      %v1185 = vpop.f32.mrf.mxu0
      %v1186 = vadd.f32 %v1120, %v1185
      %v1187 = vpop.f32.mrf.mxu0
      %1188 = vdwg.mxu0
      %v1189 = vld [vmem:[#allocation2 + $0x2] sm:$0xff]
      %v1190 = vld [vmem:[#allocation2 + $0xa] sm:$0xff]
      %v1191 = vld [vmem:[#allocation2 + $0x12] sm:$0x3]
      %v1192 = vpack.c.bf16 %v1190, %v1189
      %v1193 = vpack.c.bf16 %v1191, %v1191
      %s1194 = scalar_lea.vmem %s6, 128
      %v1195 = vld [vmem:[%s1194] sm:$0xf]
      %v1196 = vld [vmem:[%s1194 + $0x4] sm:$0xf]
      %v1197 = vld [vmem:[%s1194 + $0x8] sm:$0xf]
      %v1198 = vld [vmem:[%s1194 + $0xc] sm:$0xf]
      %v1199 = vld [vmem:[%s1194 + $0x10] sm:$0xf]
      %v1200 = vld [vmem:[%s1194 + $0x14] sm:$0xf]
      %v1201 = vld [vmem:[%s1194 + $0x18] sm:$0xf]
      %v1202 = vld [vmem:[%s1194 + $0x1c] sm:$0xf]
      %v1203 = vld [vmem:[%s1194 + $0x20] sm:$0xf]
      %v1204 = vld [vmem:[%s1194 + $0x24] sm:$0xf]
      %v1205 = vld [vmem:[%s1194 + $0x28] sm:$0xf]
      %v1206 = vld [vmem:[%s1194 + $0x2c] sm:$0xf]
      %v1207 = vld [vmem:[%s1194 + $0x30] sm:$0xf]
      %v1208 = vld [vmem:[%s1194 + $0x34] sm:$0xf]
      %v1209 = vld [vmem:[%s1194 + $0x38] sm:$0xf]
      %v1210 = vld [vmem:[%s1194 + $0x3c] sm:$0xf]
      %v1227 = vunpack.c.l.b16 %v1195
      %v1228 = vunpack.c.l.b16 %v1196
      %v1229 = vunpack.c.l.b16 %v1197
      %v1230 = vunpack.c.l.b16 %v1198
      %v1231 = vunpack.c.l.b16 %v1199
      %v1232 = vunpack.c.l.b16 %v1200
      %v1233 = vunpack.c.l.b16 %v1201
      %v1234 = vunpack.c.l.b16 %v1202
      %v1235 = vunpack.c.l.b16 %v1203
      %v1236 = vunpack.c.l.b16 %v1204
      %v1237 = vunpack.c.l.b16 %v1205
      %v1238 = vunpack.c.l.b16 %v1206
      %v1239 = vunpack.c.l.b16 %v1207
      %v1240 = vunpack.c.l.b16 %v1208
      %v1241 = vunpack.c.l.b16 %v1209
      %v1242 = vunpack.c.l.b16 %v1210
      %v1243 = vpack.c.b16 %v1228, %v1227
      %v1244 = vpack.c.b16 %v1230, %v1229
      %v1245 = vpack.c.b16 %v1232, %v1231
      %v1246 = vpack.c.b16 %v1234, %v1233
      %v1247 = vpack.c.b16 %v1236, %v1235
      %v1248 = vpack.c.b16 %v1238, %v1237
      %v1249 = vpack.c.b16 %v1240, %v1239
      %v1250 = vpack.c.b16 %v1242, %v1241
      %1259 = vmatpush.bf16.msra.mxu0 %v1250
      %1260 = vmatpush.bf16.msra.mxu0 %v1249
      %1261 = vmatpush.bf16.msra.mxu0 %v1248
      %1262 = vmatpush.bf16.msra.mxu0 %v1247
      %1263 = vmatpush.bf16.msra.mxu0 %v1246
      %1264 = vmatpush.bf16.msra.mxu0 %v1245
      %1265 = vmatpush.bf16.msra.mxu0 %v1244
      %1266 = vmatpush.bf16.msra.mxu0 %v1243
      %1267 = vmatmul.bf16.gmra.mxu0 %v1192
      %v1268 = vpop.f32.mrf.mxu0
      %v1269 = vadd.f32 0.0, %v1268
      %v1270 = vpop.f32.mrf.mxu0
      %v1271 = vadd.f32 0.0, %v1270
      %1272 = vmatmul.bf16.gmra.mxu0 %v1193
      %v1273 = vpop.f32.mrf.mxu0
      %v1274 = vadd.f32 0.0, %v1273
      %v1275 = vpop.f32.mrf.mxu0
      %1276 = vdwg.mxu0
      %v1277 = vadd.f32 %v1181, %v1269
      %v1278 = vadd.f32 %v1183, %v1271
      %v1279 = vadd.f32 %v1186, %v1274
      %v1280 = vld [vmem:[%s7] sm:$0x1]
      %v1282 = vperm.slane %v1280, 0
      %v1284 = vadd.f32 %v1277, %v1282
      %v1285 = vadd.f32 %v1278, %v1282
      %v1286 = vadd.f32 %v1279, %v1282
      %v1287 = vmax.f32 %v1284, 0.0
      %v1288 = vmax.f32 %v1285, 0.0
      %v1289 = vmax.f32 %v1286, 0.0
      %1290 = vst [vmem:[%s305 + $0x1] sm:$0xff] %v1287
      %1291 = vst [vmem:[%s305 + $0x9] sm:$0xff] %v1288
      %1292 = vst [vmem:[%s305 + $0x11] sm:$0x3] %v1289
      %1293 = vst [vmem:[%s305] sm:$0x1] 0.0
      %1294 = vst [vmem:[%s305 + $0x13] sm:$0x1] 0.0
      %p1295 = scmp.lt.s32.totalorder %s19, 1
      %s1296 = scalar_select %p1295, %s19, 1
      %s1297 = smul.addr %s1296, 3
      %s1298 = smul.addr %s1297, 8
      %s1299 = scalar_lea.vmem %s8, %s1298
      // Predicated region
      $region53: #{conv_deconv_block_forward.1} parent=51 // pred_check
        %p1300 = pneg %p210
      $region54: #{conv_deconv_block_forward.1} parent=51 // pred_check_branch
        %1302 = sbr.rel (%p1300) target = $region56
      $region55: #{conv_deconv_block_forward.1} parent=51 // pred_region
        _
      $region56: #{conv_deconv_block_forward.1} parent=51 // pred_fallthru
        _
    $region52: #{conv_deconv_block_forward.1} parent=5 // pred_fallthru
      _
    %p1303 = scmp.le.s32.totalorder 2, %s14
    // Predicated region
    $region57: #{conv_deconv_block_forward.1} parent=5 // pred_check
      %p1304 = pneg %p1303
    $region58: #{conv_deconv_block_forward.1} parent=5 // pred_check_branch
      %1306 = sbr.rel (%p1304) target = $region60
    $region59: #{conv_deconv_block_forward.1} parent=5 // pred_region
      %s1307 = ssub.s32 %s14, 2
      // Predicated region
      $region61: #{conv_deconv_block_forward.1} parent=59 // pred_check
        %p1308 = pneg %p216
      $region62: #{conv_deconv_block_forward.1} parent=59 // pred_check_branch
        %1310 = sbr.rel (%p1308) target = $region64
      $region63: #{conv_deconv_block_forward.1} parent=59 // pred_region
        %p1311 = scmp.lt.s32.totalorder %s20, 1
        %s1312 = scalar_select %p1311, %s20, 1
        %s1313 = smul.addr %s1312, 3
        %s1314 = smul.addr %s1313, 8
        %s1315 = scalar_lea.vmem %s8, %s1314
      $region64: #{conv_deconv_block_forward.1} parent=59 // pred_fallthru
        _
    $region60: #{conv_deconv_block_forward.1} parent=5 // pred_fallthru
      _
  $region6: #{conv_deconv_block_forward.1} parent=0 // loop_footer
    %s18 = sadd.s32 1, %s14
  $region7: #{conv_deconv_block_forward.1} parent=0 // loop_footer_branch
    %13 = sbr.rel target = $region3
  $region8: #{conv_deconv_block_forward.1} parent=0 // loop_exit
    _

</llo_original>
